<compile_context>
chip_gen: v6e
topology: v6e:2x2x1
jax: 0.10.0
libtpu: 0.0.40
codegen_flags: <defaults>
</compile_context>

<pallas_src>
import math
import jax
import jax.numpy as jnp
from jax import lax
from jax.experimental import pallas as pl
from jax.experimental.pallas import tpu as pltpu

# Small, module-consistent shapes.
B, S, D, H, DFF = 2, 8, 32, 4, 64
DK = D // H
N = B * S                       # batch folded into rows
EPS = 1e-6
NEG_INF = -1e9

# dot_general dimension-number shorthands (both used by official TPU kernels).
NT = (((1,), (1,)), ((), ()))   # A @ B^T
TN = (((0,), (0,)), ((), ()))   # A^T @ B


def _layernorm(x, gamma, beta):
    # Matches the torch LayerNorm in net.py: torch.std uses Bessel correction
    # (divide by N-1) and epsilon is added to std (not variance).
    mean = jnp.mean(x, axis=-1, keepdims=True)
    xm = x - mean                                              # reused below
    var = jnp.sum(xm * xm, axis=-1, keepdims=True) * (1.0 / (x.shape[-1] - 1))
    inv = pl.reciprocal(jnp.sqrt(var) + EPS)                   # exact (approx=False)
    return gamma * (xm * inv) + beta


def encoder_layer_kernel(x_ref, bias_ref, wqkv_ref, bqkv_ref, wo_ref,
                         w1_ref, w2_ref, vecd_ref, b1f_ref, out_ref):
    x = x_ref[...]                         # (N, D)  batch folded into rows
    bias = bias_ref[...]                   # (N, N)  additive block-diagonal mask
    a1, b1 = vecd_ref[0:1, :], vecd_ref[1:2, :]
    a2, b2 = vecd_ref[2:3, :], vecd_ref[3:4, :]
    bo, b2f = vecd_ref[4:5, :], vecd_ref[5:6, :]

    # ---- sublayer 1: multi-head self-attention over LayerNorm(x) ----
    y = _layernorm(x, a1, b1)                                            # (N, D)
    # Fused, head-major QKV projection (heads live on sublanes):
    #   qkvT[f, n] = sum_d wqkv[f, d] * y[n, d]        -> (3D, N)
    # 1/sqrt(d_k) is already folded into the Q rows of wqkv / bqkv.
    qkvT = lax.dot_general(wqkv_ref[...], y, NT,
                           preferred_element_type=jnp.float32)
    qkvT = qkvT + bqkv_ref[...]                                          # (3D,1) bcast

    attn = None
    for h in range(H):                     # static loop; all slices sublane-aligned
        qh = qkvT[h * DK:(h + 1) * DK, :]                                # (DK, N)
        kh = qkvT[D + h * DK:D + (h + 1) * DK, :]                        # (DK, N)
        vh = qkvT[2 * D + h * DK:2 * D + (h + 1) * DK, :]                # (DK, N)
        s = lax.dot_general(qh, kh, TN,
                            preferred_element_type=jnp.float32)         # (N, N)
        s = s + bias                       # additive mask (masked keys -> -1e9)
        m = jnp.max(s, axis=-1, keepdims=True)
        e = jnp.exp(s - m)
        p = e * pl.reciprocal(jnp.sum(e, axis=-1, keepdims=True))
        # TODO(synk): attention-prob dropout skipped (inference semantics).
        oh = lax.dot_general(p, vh, NT,
                             preferred_element_type=jnp.float32)        # (N, DK)
        # Per-head accumulation into the output projection (no lane concat).
        contrib = jnp.dot(oh, wo_ref[h * DK:(h + 1) * DK, :],
                          preferred_element_type=jnp.float32)           # (N, D)
        attn = contrib if attn is None else attn + contrib
    attn = attn + bo
    # TODO(synk): F.dropout after attention skipped (inference semantics).
    r1 = x + attn

    # ---- sublayer 2: position-wise FFN (Conv1d k=1 == matmul) over LayerNorm ----
    y2 = _layernorm(r1, a2, b2)
    h1 = jnp.dot(y2, w1_ref[...], preferred_element_type=jnp.float32) + b1f_ref[...]
    h1 = jnp.maximum(h1, 0.0)
    ff = jnp.dot(h1, w2_ref[...], preferred_element_type=jnp.float32) + b2f
    # TODO(synk): F.dropout after feed-forward skipped (inference semantics).
    out_ref[...] = (r1 + ff).astype(out_ref.dtype)


def encoder_layer(x, mask, params):
    (a1, b1, wq, bq, wk, bk, wv, bv, wo, bo, a2, b2, w1, b1f, w2, b2f) = params

    scale = 1.0 / math.sqrt(DK)
    # Fused QKV slab, head-major rows (nn.Linear-style (out, in) layout);
    # 1/sqrt(d_k) folded into the Q rows and Q bias.
    w_qkv = jnp.concatenate([wq.T * scale, wk.T, wv.T], axis=0)          # (3D, D)
    b_qkv = jnp.concatenate([bq.T * scale, bk.T, bv.T], axis=0)          # (3D, 1)
    # All D-wide vectors packed into one slab.
    vec_d = jnp.concatenate([a1, b1, a2, b2, bo, b2f], axis=0)           # (6, D)

    # Fold batch into rows and build an additive block-diagonal mask so a single
    # (N, N) softmax per head never attends across batches; masked / cross-batch
    # entries get -1e9 exactly like masked_fill in the reference.
    x_flat = x.reshape(N, D)
    allowed = jnp.zeros((N, N), dtype=bool)
    for b in range(B):
        allowed = allowed.at[b * S:(b + 1) * S, b * S:(b + 1) * S].set(mask[b] != 0)
    mask_bias = jnp.where(allowed, 0.0, NEG_INF).astype(jnp.float32)

    # Single invocation (no grid): every operand is a whole-array VMEM block.
    # Total footprint is < 100 KiB, far under VMEM on v5e/v6e/v7x.
    vmem = pl.BlockSpec(memory_space=pltpu.MemorySpace.VMEM)
    out = pl.pallas_call(
        encoder_layer_kernel,
        out_shape=jax.ShapeDtypeStruct((N, D), jnp.float32),
        in_specs=[vmem] * 9,
        out_specs=vmem,
    )(x_flat, mask_bias, w_qkv, b_qkv, wo, w1, w2, vec_d, b1f)
    return out.reshape(B, S, D)


def reference(x, mask, p):
    (a1, b1, wq, bq, wk, bk, wv, bv, wo, bo, a2, b2, w1, b1f, w2, b2f) = p

    def ln(t, a, b):
        mean = t.mean(-1, keepdims=True)
        var = ((t - mean) ** 2).sum(-1, keepdims=True) / (t.shape[-1] - 1)
        return a[0] * (t - mean) / (jnp.sqrt(var) + EPS) + b[0]

    y = ln(x, a1, b1)
    q = y @ wq + bq[0]
    k = y @ wk + bk[0]
    v = y @ wv + bv[0]
    qh = q.reshape(B, S, H, DK).transpose(0, 2, 1, 3)
    kh = k.reshape(B, S, H, DK).transpose(0, 2, 1, 3)
    vh = v.reshape(B, S, H, DK).transpose(0, 2, 1, 3)
    scores = jnp.einsum('bhqd,bhkd->bhqk', qh, kh) / math.sqrt(DK)
    scores = jnp.where(mask[:, None] == 0, NEG_INF, scores)
    p_attn = jax.nn.softmax(scores, axis=-1)
    o = jnp.einsum('bhqk,bhkd->bhqd', p_attn, vh).transpose(0, 2, 1, 3).reshape(B, S, D)
    attn = o @ wo + bo[0]
    r1 = x + attn
    y2 = ln(r1, a2, b2)
    ff = jnp.maximum(y2 @ w1 + b1f[0], 0.0) @ w2 + b2f[0]
    return r1 + ff


if __name__ == "__main__":
    key = jax.random.PRNGKey(0)
    ks = jax.random.split(key, 16)

    def rnd(k, shape, scale=0.1):
        return (scale * jax.random.normal(k, shape)).astype(jnp.float32)

    # Parameters (weights stored pre-transposed so math is x @ W + b, matching
    # nn.Linear / Conv1d(kernel_size=1) semantics).
    params = (
        jnp.ones((1, D), jnp.float32), jnp.zeros((1, D), jnp.float32),   # n1 a2, b2
        rnd(ks[0], (D, D)), rnd(ks[1], (1, D)),                          # Wq, bq
        rnd(ks[2], (D, D)), rnd(ks[3], (1, D)),                          # Wk, bk
        rnd(ks[4], (D, D)), rnd(ks[5], (1, D)),                          # Wv, bv
        rnd(ks[6], (D, D)), rnd(ks[7], (1, D)),                          # Wo, bo
        jnp.ones((1, D), jnp.float32), jnp.zeros((1, D), jnp.float32),   # n2 a2, b2
        rnd(ks[8], (D, DFF)), rnd(ks[9], (1, DFF)),                      # FFN w1, b1
        rnd(ks[10], (DFF, D)), rnd(ks[11], (1, D)),                      # FFN w2, b2
    )

    x = rnd(ks[12], (B, S, D), scale=1.0)
    # Padding-style attention mask: batch 0 attends to all 8 keys, batch 1 to 6.
    lengths = jnp.array([8, 6])
    mask = (jnp.arange(S)[None, None, :] < lengths[:, None, None]).astype(jnp.float32)
    mask = jnp.broadcast_to(mask, (B, S, S))

    out = encoder_layer(x, mask, params)
    out = jax.block_until_ready(out)

    ref = reference(x, mask, params)
    assert out.shape == (B, S, D)
    assert jnp.allclose(out, ref, rtol=1e-4, atol=1e-4), (
        f"max abs err {jnp.max(jnp.abs(out - ref))}")
    print("KERNEL_OK")
</pallas_src>

<mosaic_0001>
module attributes {stable_mosaic.version = 11 : i64} {
  func.func @encoder_layer_kernel(%arg0: memref<16x32xf32, #tpu.memory_space<vmem>>, %arg1: memref<16x16xf32, #tpu.memory_space<vmem>>, %arg2: memref<96x32xf32, #tpu.memory_space<vmem>>, %arg3: memref<96x1xf32, #tpu.memory_space<vmem>>, %arg4: memref<32x32xf32, #tpu.memory_space<vmem>>, %arg5: memref<32x64xf32, #tpu.memory_space<vmem>>, %arg6: memref<64x32xf32, #tpu.memory_space<vmem>>, %arg7: memref<6x32xf32, #tpu.memory_space<vmem>>, %arg8: memref<1x64xf32, #tpu.memory_space<vmem>>, %arg9: memref<16x32xf32, #tpu.memory_space<vmem>>) attributes {dimension_semantics = [], scalar_prefetch = 0 : i64, scratch_operands = 0 : i64, tpu.core_type = #tpu.core_type<tc>} {
    %c0 = arith.constant 0 : index
    %c0_0 = arith.constant 0 : index
    %0 = vector.load %arg0[%c0, %c0_0] : memref<16x32xf32, #tpu.memory_space<vmem>>, vector<16x32xf32>
    %c0_1 = arith.constant 0 : index
    %c0_2 = arith.constant 0 : index
    %1 = vector.load %arg1[%c0_1, %c0_2] : memref<16x16xf32, #tpu.memory_space<vmem>>, vector<16x16xf32>
    %c0_3 = arith.constant 0 : index
    %c0_4 = arith.constant 0 : index
    %2 = vector.load %arg7[%c0_3, %c0_4] : memref<6x32xf32, #tpu.memory_space<vmem>>, vector<1x32xf32>
    %c1 = arith.constant 1 : index
    %c0_5 = arith.constant 0 : index
    %3 = vector.load %arg7[%c1, %c0_5] : memref<6x32xf32, #tpu.memory_space<vmem>>, vector<1x32xf32>
    %c2 = arith.constant 2 : index
    %c0_6 = arith.constant 0 : index
    %4 = vector.load %arg7[%c2, %c0_6] : memref<6x32xf32, #tpu.memory_space<vmem>>, vector<1x32xf32>
    %c3 = arith.constant 3 : index
    %c0_7 = arith.constant 0 : index
    %5 = vector.load %arg7[%c3, %c0_7] : memref<6x32xf32, #tpu.memory_space<vmem>>, vector<1x32xf32>
    %c4 = arith.constant 4 : index
    %c0_8 = arith.constant 0 : index
    %6 = vector.load %arg7[%c4, %c0_8] : memref<6x32xf32, #tpu.memory_space<vmem>>, vector<1x32xf32>
    %c5 = arith.constant 5 : index
    %c0_9 = arith.constant 0 : index
    %7 = vector.load %arg7[%c5, %c0_9] : memref<6x32xf32, #tpu.memory_space<vmem>>, vector<1x32xf32>
    %cst = arith.constant dense<0.000000e+00> : vector<16xf32>
    %8 = vector.multi_reduction <add>, %0, %cst [1] : vector<16x32xf32> to vector<16xf32>
    %9 = vector.shape_cast %8 : vector<16xf32> to vector<16x1xf32>
    %cst_10 = arith.constant 3.200000e+01 : f32
    %10 = vector.broadcast %cst_10 : f32 to vector<16x1xf32>
    %11 = arith.divf %9, %10 : vector<16x1xf32>
    %12 = vector.broadcast %11 : vector<16x1xf32> to vector<16x32xf32>
    %13 = arith.subf %0, %12 : vector<16x32xf32>
    %14 = arith.mulf %13, %13 : vector<16x32xf32>
    %cst_11 = arith.constant dense<0.000000e+00> : vector<16xf32>
    %15 = vector.multi_reduction <add>, %14, %cst_11 [1] : vector<16x32xf32> to vector<16xf32>
    %16 = vector.shape_cast %15 : vector<16xf32> to vector<16x1xf32>
    %cst_12 = arith.constant 0.0322580636 : f32
    %17 = vector.broadcast %cst_12 : f32 to vector<16x1xf32>
    %18 = arith.mulf %16, %17 : vector<16x1xf32>
    %19 = math.sqrt %18 : vector<16x1xf32>
    %cst_13 = arith.constant 9.99999997E-7 : f32
    %20 = vector.broadcast %cst_13 : f32 to vector<16x1xf32>
    %21 = arith.addf %19, %20 : vector<16x1xf32>
    %22 = tpu.reciprocal %21 : vector<16x1xf32> -> vector<16x1xf32>
    %23 = vector.broadcast %22 : vector<16x1xf32> to vector<16x32xf32>
    %24 = arith.mulf %13, %23 : vector<16x32xf32>
    %25 = vector.broadcast %2 : vector<1x32xf32> to vector<16x32xf32>
    %26 = arith.mulf %25, %24 : vector<16x32xf32>
    %27 = vector.broadcast %3 : vector<1x32xf32> to vector<16x32xf32>
    %28 = arith.addf %26, %27 : vector<16x32xf32>
    %c0_14 = arith.constant 0 : index
    %c0_15 = arith.constant 0 : index
    %29 = vector.load %arg2[%c0_14, %c0_15] : memref<96x32xf32, #tpu.memory_space<vmem>>, vector<96x32xf32>
    %cst_16 = arith.constant dense<0.000000e+00> : vector<96x16xf32>
    %30 = tpu.matmul %29, %28, %cst_16 {dimension_numbers = #tpu.dot_dimension_numbers<[1], [1], [0], [0], [0, 0, 1, 0], [], []>} : vector<96x32xf32>, vector<16x32xf32>, vector<96x16xf32> -> vector<96x16xf32>
    %c0_17 = arith.constant 0 : index
    %c0_18 = arith.constant 0 : index
    %31 = vector.load %arg3[%c0_17, %c0_18] : memref<96x1xf32, #tpu.memory_space<vmem>>, vector<96x1xf32>
    %32 = vector.broadcast %31 : vector<96x1xf32> to vector<96x16xf32>
    %33 = arith.addf %30, %32 : vector<96x16xf32>
    %34 = vector.extract_strided_slice %33 {offsets = [0, 0], sizes = [8, 16], strides = [1, 1]} : vector<96x16xf32> to vector<8x16xf32>
    %35 = vector.extract_strided_slice %33 {offsets = [32, 0], sizes = [8, 16], strides = [1, 1]} : vector<96x16xf32> to vector<8x16xf32>
    %36 = vector.extract_strided_slice %33 {offsets = [64, 0], sizes = [8, 16], strides = [1, 1]} : vector<96x16xf32> to vector<8x16xf32>
    %cst_19 = arith.constant dense<0.000000e+00> : vector<16x16xf32>
    %37 = tpu.matmul %34, %35, %cst_19 {dimension_numbers = #tpu.dot_dimension_numbers<[0], [0], [1], [1], [0, 1, 1, 1], [], []>} : vector<8x16xf32>, vector<8x16xf32>, vector<16x16xf32> -> vector<16x16xf32>
    %38 = arith.addf %37, %1 : vector<16x16xf32>
    %cst_20 = arith.constant dense<0xFF800000> : vector<16xf32>
    %39 = vector.multi_reduction <maximumf>, %38, %cst_20 [1] : vector<16x16xf32> to vector<16xf32>
    %40 = vector.shape_cast %39 : vector<16xf32> to vector<16x1xf32>
    %41 = vector.broadcast %40 : vector<16x1xf32> to vector<16x16xf32>
    %42 = arith.subf %38, %41 : vector<16x16xf32>
    %43 = math.exp %42 : vector<16x16xf32>
    %cst_21 = arith.constant dense<0.000000e+00> : vector<16xf32>
    %44 = vector.multi_reduction <add>, %43, %cst_21 [1] : vector<16x16xf32> to vector<16xf32>
    %45 = vector.shape_cast %44 : vector<16xf32> to vector<16x1xf32>
    %46 = tpu.reciprocal %45 : vector<16x1xf32> -> vector<16x1xf32>
    %47 = vector.broadcast %46 : vector<16x1xf32> to vector<16x16xf32>
    %48 = arith.mulf %43, %47 : vector<16x16xf32>
    %cst_22 = arith.constant dense<0.000000e+00> : vector<16x8xf32>
    %49 = tpu.matmul %48, %36, %cst_22 {dimension_numbers = #tpu.dot_dimension_numbers<[1], [1], [0], [0], [0, 0, 1, 0], [], []>} : vector<16x16xf32>, vector<8x16xf32>, vector<16x8xf32> -> vector<16x8xf32>
    %c0_23 = arith.constant 0 : index
    %c0_24 = arith.constant 0 : index
    %50 = vector.load %arg4[%c0_23, %c0_24] : memref<32x32xf32, #tpu.memory_space<vmem>>, vector<8x32xf32>
    %cst_25 = arith.constant dense<0.000000e+00> : vector<16x32xf32>
    %51 = tpu.matmul %49, %50, %cst_25 {dimension_numbers = #tpu.dot_dimension_numbers<[1], [0], [0], [1], [0, 0, 1, 1], [], []>} : vector<16x8xf32>, vector<8x32xf32>, vector<16x32xf32> -> vector<16x32xf32>
    %52 = vector.extract_strided_slice %33 {offsets = [8, 0], sizes = [8, 16], strides = [1, 1]} : vector<96x16xf32> to vector<8x16xf32>
    %53 = vector.extract_strided_slice %33 {offsets = [40, 0], sizes = [8, 16], strides = [1, 1]} : vector<96x16xf32> to vector<8x16xf32>
    %54 = vector.extract_strided_slice %33 {offsets = [72, 0], sizes = [8, 16], strides = [1, 1]} : vector<96x16xf32> to vector<8x16xf32>
    %cst_26 = arith.constant dense<0.000000e+00> : vector<16x16xf32>
    %55 = tpu.matmul %52, %53, %cst_26 {dimension_numbers = #tpu.dot_dimension_numbers<[0], [0], [1], [1], [0, 1, 1, 1], [], []>} : vector<8x16xf32>, vector<8x16xf32>, vector<16x16xf32> -> vector<16x16xf32>
    %56 = arith.addf %55, %1 : vector<16x16xf32>
    %cst_27 = arith.constant dense<0xFF800000> : vector<16xf32>
    %57 = vector.multi_reduction <maximumf>, %56, %cst_27 [1] : vector<16x16xf32> to vector<16xf32>
    %58 = vector.shape_cast %57 : vector<16xf32> to vector<16x1xf32>
    %59 = vector.broadcast %58 : vector<16x1xf32> to vector<16x16xf32>
    %60 = arith.subf %56, %59 : vector<16x16xf32>
    %61 = math.exp %60 : vector<16x16xf32>
    %cst_28 = arith.constant dense<0.000000e+00> : vector<16xf32>
    %62 = vector.multi_reduction <add>, %61, %cst_28 [1] : vector<16x16xf32> to vector<16xf32>
    %63 = vector.shape_cast %62 : vector<16xf32> to vector<16x1xf32>
    %64 = tpu.reciprocal %63 : vector<16x1xf32> -> vector<16x1xf32>
    %65 = vector.broadcast %64 : vector<16x1xf32> to vector<16x16xf32>
    %66 = arith.mulf %61, %65 : vector<16x16xf32>
    %cst_29 = arith.constant dense<0.000000e+00> : vector<16x8xf32>
    %67 = tpu.matmul %66, %54, %cst_29 {dimension_numbers = #tpu.dot_dimension_numbers<[1], [1], [0], [0], [0, 0, 1, 0], [], []>} : vector<16x16xf32>, vector<8x16xf32>, vector<16x8xf32> -> vector<16x8xf32>
    %c8 = arith.constant 8 : index
    %c0_30 = arith.constant 0 : index
    %68 = vector.load %arg4[%c8, %c0_30] : memref<32x32xf32, #tpu.memory_space<vmem>>, vector<8x32xf32>
    %cst_31 = arith.constant dense<0.000000e+00> : vector<16x32xf32>
    %69 = tpu.matmul %67, %68, %cst_31 {dimension_numbers = #tpu.dot_dimension_numbers<[1], [0], [0], [1], [0, 0, 1, 1], [], []>} : vector<16x8xf32>, vector<8x32xf32>, vector<16x32xf32> -> vector<16x32xf32>
    %70 = arith.addf %51, %69 : vector<16x32xf32>
    %71 = vector.extract_strided_slice %33 {offsets = [16, 0], sizes = [8, 16], strides = [1, 1]} : vector<96x16xf32> to vector<8x16xf32>
    %72 = vector.extract_strided_slice %33 {offsets = [48, 0], sizes = [8, 16], strides = [1, 1]} : vector<96x16xf32> to vector<8x16xf32>
    %73 = vector.extract_strided_slice %33 {offsets = [80, 0], sizes = [8, 16], strides = [1, 1]} : vector<96x16xf32> to vector<8x16xf32>
    %cst_32 = arith.constant dense<0.000000e+00> : vector<16x16xf32>
    %74 = tpu.matmul %71, %72, %cst_32 {dimension_numbers = #tpu.dot_dimension_numbers<[0], [0], [1], [1], [0, 1, 1, 1], [], []>} : vector<8x16xf32>, vector<8x16xf32>, vector<16x16xf32> -> vector<16x16xf32>
    %75 = arith.addf %74, %1 : vector<16x16xf32>
    %cst_33 = arith.constant dense<0xFF800000> : vector<16xf32>
    %76 = vector.multi_reduction <maximumf>, %75, %cst_33 [1] : vector<16x16xf32> to vector<16xf32>
    %77 = vector.shape_cast %76 : vector<16xf32> to vector<16x1xf32>
    %78 = vector.broadcast %77 : vector<16x1xf32> to vector<16x16xf32>
    %79 = arith.subf %75, %78 : vector<16x16xf32>
    %80 = math.exp %79 : vector<16x16xf32>
    %cst_34 = arith.constant dense<0.000000e+00> : vector<16xf32>
    %81 = vector.multi_reduction <add>, %80, %cst_34 [1] : vector<16x16xf32> to vector<16xf32>
    %82 = vector.shape_cast %81 : vector<16xf32> to vector<16x1xf32>
    %83 = tpu.reciprocal %82 : vector<16x1xf32> -> vector<16x1xf32>
    %84 = vector.broadcast %83 : vector<16x1xf32> to vector<16x16xf32>
    %85 = arith.mulf %80, %84 : vector<16x16xf32>
    %cst_35 = arith.constant dense<0.000000e+00> : vector<16x8xf32>
    %86 = tpu.matmul %85, %73, %cst_35 {dimension_numbers = #tpu.dot_dimension_numbers<[1], [1], [0], [0], [0, 0, 1, 0], [], []>} : vector<16x16xf32>, vector<8x16xf32>, vector<16x8xf32> -> vector<16x8xf32>
    %c16 = arith.constant 16 : index
    %c0_36 = arith.constant 0 : index
    %87 = vector.load %arg4[%c16, %c0_36] : memref<32x32xf32, #tpu.memory_space<vmem>>, vector<8x32xf32>
    %cst_37 = arith.constant dense<0.000000e+00> : vector<16x32xf32>
    %88 = tpu.matmul %86, %87, %cst_37 {dimension_numbers = #tpu.dot_dimension_numbers<[1], [0], [0], [1], [0, 0, 1, 1], [], []>} : vector<16x8xf32>, vector<8x32xf32>, vector<16x32xf32> -> vector<16x32xf32>
    %89 = arith.addf %70, %88 : vector<16x32xf32>
    %90 = vector.extract_strided_slice %33 {offsets = [24, 0], sizes = [8, 16], strides = [1, 1]} : vector<96x16xf32> to vector<8x16xf32>
    %91 = vector.extract_strided_slice %33 {offsets = [56, 0], sizes = [8, 16], strides = [1, 1]} : vector<96x16xf32> to vector<8x16xf32>
    %92 = vector.extract_strided_slice %33 {offsets = [88, 0], sizes = [8, 16], strides = [1, 1]} : vector<96x16xf32> to vector<8x16xf32>
    %cst_38 = arith.constant dense<0.000000e+00> : vector<16x16xf32>
    %93 = tpu.matmul %90, %91, %cst_38 {dimension_numbers = #tpu.dot_dimension_numbers<[0], [0], [1], [1], [0, 1, 1, 1], [], []>} : vector<8x16xf32>, vector<8x16xf32>, vector<16x16xf32> -> vector<16x16xf32>
    %94 = arith.addf %93, %1 : vector<16x16xf32>
    %cst_39 = arith.constant dense<0xFF800000> : vector<16xf32>
    %95 = vector.multi_reduction <maximumf>, %94, %cst_39 [1] : vector<16x16xf32> to vector<16xf32>
    %96 = vector.shape_cast %95 : vector<16xf32> to vector<16x1xf32>
    %97 = vector.broadcast %96 : vector<16x1xf32> to vector<16x16xf32>
    %98 = arith.subf %94, %97 : vector<16x16xf32>
    %99 = math.exp %98 : vector<16x16xf32>
    %cst_40 = arith.constant dense<0.000000e+00> : vector<16xf32>
    %100 = vector.multi_reduction <add>, %99, %cst_40 [1] : vector<16x16xf32> to vector<16xf32>
    %101 = vector.shape_cast %100 : vector<16xf32> to vector<16x1xf32>
    %102 = tpu.reciprocal %101 : vector<16x1xf32> -> vector<16x1xf32>
    %103 = vector.broadcast %102 : vector<16x1xf32> to vector<16x16xf32>
    %104 = arith.mulf %99, %103 : vector<16x16xf32>
    %cst_41 = arith.constant dense<0.000000e+00> : vector<16x8xf32>
    %105 = tpu.matmul %104, %92, %cst_41 {dimension_numbers = #tpu.dot_dimension_numbers<[1], [1], [0], [0], [0, 0, 1, 0], [], []>} : vector<16x16xf32>, vector<8x16xf32>, vector<16x8xf32> -> vector<16x8xf32>
    %c24 = arith.constant 24 : index
    %c0_42 = arith.constant 0 : index
    %106 = vector.load %arg4[%c24, %c0_42] : memref<32x32xf32, #tpu.memory_space<vmem>>, vector<8x32xf32>
    %cst_43 = arith.constant dense<0.000000e+00> : vector<16x32xf32>
    %107 = tpu.matmul %105, %106, %cst_43 {dimension_numbers = #tpu.dot_dimension_numbers<[1], [0], [0], [1], [0, 0, 1, 1], [], []>} : vector<16x8xf32>, vector<8x32xf32>, vector<16x32xf32> -> vector<16x32xf32>
    %108 = arith.addf %89, %107 : vector<16x32xf32>
    %109 = vector.broadcast %6 : vector<1x32xf32> to vector<16x32xf32>
    %110 = arith.addf %108, %109 : vector<16x32xf32>
    %111 = arith.addf %0, %110 : vector<16x32xf32>
    %cst_44 = arith.constant dense<0.000000e+00> : vector<16xf32>
    %112 = vector.multi_reduction <add>, %111, %cst_44 [1] : vector<16x32xf32> to vector<16xf32>
    %113 = vector.shape_cast %112 : vector<16xf32> to vector<16x1xf32>
    %cst_45 = arith.constant 3.200000e+01 : f32
    %114 = vector.broadcast %cst_45 : f32 to vector<16x1xf32>
    %115 = arith.divf %113, %114 : vector<16x1xf32>
    %116 = vector.broadcast %115 : vector<16x1xf32> to vector<16x32xf32>
    %117 = arith.subf %111, %116 : vector<16x32xf32>
    %118 = arith.mulf %117, %117 : vector<16x32xf32>
    %cst_46 = arith.constant dense<0.000000e+00> : vector<16xf32>
    %119 = vector.multi_reduction <add>, %118, %cst_46 [1] : vector<16x32xf32> to vector<16xf32>
    %120 = vector.shape_cast %119 : vector<16xf32> to vector<16x1xf32>
    %cst_47 = arith.constant 0.0322580636 : f32
    %121 = vector.broadcast %cst_47 : f32 to vector<16x1xf32>
    %122 = arith.mulf %120, %121 : vector<16x1xf32>
    %123 = math.sqrt %122 : vector<16x1xf32>
    %cst_48 = arith.constant 9.99999997E-7 : f32
    %124 = vector.broadcast %cst_48 : f32 to vector<16x1xf32>
    %125 = arith.addf %123, %124 : vector<16x1xf32>
    %126 = tpu.reciprocal %125 : vector<16x1xf32> -> vector<16x1xf32>
    %127 = vector.broadcast %126 : vector<16x1xf32> to vector<16x32xf32>
    %128 = arith.mulf %117, %127 : vector<16x32xf32>
    %129 = vector.broadcast %4 : vector<1x32xf32> to vector<16x32xf32>
    %130 = arith.mulf %129, %128 : vector<16x32xf32>
    %131 = vector.broadcast %5 : vector<1x32xf32> to vector<16x32xf32>
    %132 = arith.addf %130, %131 : vector<16x32xf32>
    %c0_49 = arith.constant 0 : index
    %c0_50 = arith.constant 0 : index
    %133 = vector.load %arg5[%c0_49, %c0_50] : memref<32x64xf32, #tpu.memory_space<vmem>>, vector<32x64xf32>
    %cst_51 = arith.constant dense<0.000000e+00> : vector<16x64xf32>
    %134 = tpu.matmul %132, %133, %cst_51 {dimension_numbers = #tpu.dot_dimension_numbers<[1], [0], [0], [1], [0, 0, 1, 1], [], []>} : vector<16x32xf32>, vector<32x64xf32>, vector<16x64xf32> -> vector<16x64xf32>
    %c0_52 = arith.constant 0 : index
    %c0_53 = arith.constant 0 : index
    %135 = vector.load %arg8[%c0_52, %c0_53] : memref<1x64xf32, #tpu.memory_space<vmem>>, vector<1x64xf32>
    %136 = vector.broadcast %135 : vector<1x64xf32> to vector<16x64xf32>
    %137 = arith.addf %134, %136 : vector<16x64xf32>
    %cst_54 = arith.constant 0.000000e+00 : f32
    %138 = vector.broadcast %cst_54 : f32 to vector<16x64xf32>
    %139 = arith.maximumf %137, %138 : vector<16x64xf32>
    %c0_55 = arith.constant 0 : index
    %c0_56 = arith.constant 0 : index
    %140 = vector.load %arg6[%c0_55, %c0_56] : memref<64x32xf32, #tpu.memory_space<vmem>>, vector<64x32xf32>
    %cst_57 = arith.constant dense<0.000000e+00> : vector<16x32xf32>
    %141 = tpu.matmul %139, %140, %cst_57 {dimension_numbers = #tpu.dot_dimension_numbers<[1], [0], [0], [1], [0, 0, 1, 1], [], []>} : vector<16x64xf32>, vector<64x32xf32>, vector<16x32xf32> -> vector<16x32xf32>
    %142 = vector.broadcast %7 : vector<1x32xf32> to vector<16x32xf32>
    %143 = arith.addf %141, %142 : vector<16x32xf32>
    %144 = arith.addf %111, %143 : vector<16x32xf32>
    %c0_58 = arith.constant 0 : index
    %c0_59 = arith.constant 0 : index
    %145 = vector.load %arg9[%c0_58, %c0_59] : memref<16x32xf32, #tpu.memory_space<vmem>>, vector<16x32xf32>
    tpu.vector_store %arg9[%c0_58, %c0_59], %144 {strides = array<i32>} : memref<16x32xf32, #tpu.memory_space<vmem>>, vector<16x32xf32>,
    return
  }
}

</mosaic_0001>

<llo_original>
// kernel: tpu_custom_call.1
$region0: #{tpu_custom_call.1}
  #allocation0 [shape = 'u32[]', space=smem, size = 0x4, offset = 0x4, fixed_abs, tag = 'smem constant byte address 0x4 - core index']
  #allocation1 [shape = 'u32[144,128]{1,0:T(1,128)}', space=vmem, size = 0x12000, scoped, tag = 'internal scratch']
  %s0 = inlined_call_operand.vmem [shape: f32[16,32], index: 0, kind: input, shape index: {}]
  %s1 = inlined_call_operand.vmem [shape: f32[16,16], index: 1, kind: input, shape index: {}]
  %s2 = inlined_call_operand.vmem [shape: f32[96,32], index: 2, kind: input, shape index: {}]
  %s3 = inlined_call_operand.vmem [shape: f32[96,1], index: 3, kind: input, shape index: {}]
  %s4 = inlined_call_operand.vmem [shape: f32[32,32], index: 4, kind: input, shape index: {}]
  %s5 = inlined_call_operand.vmem [shape: f32[32,64], index: 5, kind: input, shape index: {}]
  %s6 = inlined_call_operand.vmem [shape: f32[64,32], index: 6, kind: input, shape index: {}]
  %s7 = inlined_call_operand.vmem [shape: f32[6,32], index: 7, kind: input, shape index: {}]
  %s8 = inlined_call_operand.vmem [shape: f32[1,64], index: 8, kind: input, shape index: {}]
  %s9 = inlined_call_operand.hbm [shape: f32[16,32], index: 9, kind: output, shape index: {}]
  %s10 = sld [smem:[#allocation0]]
  $region46: #{tpu_custom_call.1} parent=0
    _
  %s12 = ssub.s32 1, %s10
  %s13 = scalar_select 0, %s12, %s10
  $region1: #{tpu_custom_call.1} parent=0
    #allocation2 [shape = 'u8[8192]{0}', space=vmem, size = 0x2000, scoped, tag = 'output window, operand 0, single buffered']
    #allocation3 [shape = 's32[1]{0}', space=sflag, size = 0x4, scoped, tag = 'scoped memory for tpu_custom_call.1']
    %14 = vsyncpa [#allocation3], 0
    // Predicated region
    $region2: #{tpu_custom_call.1} parent=1 // pred_check
      _
    $region3: #{tpu_custom_call.1} parent=1 // pred_check_branch
      %16 = sbr.rel (0) target = $region5
    $region4: #{tpu_custom_call.1} parent=1 // pred_region
      _
    $region5: #{tpu_custom_call.1} parent=1 // pred_fallthru
      _
    // Predicated region
    $region6: #{tpu_custom_call.1} parent=1 // pred_check
      _
    $region7: #{tpu_custom_call.1} parent=1 // pred_check_branch
      %18 = sbr.rel (0) target = $region9
    $region8: #{tpu_custom_call.1} parent=1 // pred_region
      _
    $region9: #{tpu_custom_call.1} parent=1 // pred_fallthru
      _
    // Predicated region
    $region10: #{tpu_custom_call.1} parent=1 // pred_check
      _
    $region11: #{tpu_custom_call.1} parent=1 // pred_check_branch
      %20 = sbr.rel (0) target = $region13
    $region12: #{tpu_custom_call.1} parent=1 // pred_region
      _
    $region13: #{tpu_custom_call.1} parent=1 // pred_fallthru
      _
    // Predicated region
    $region14: #{tpu_custom_call.1} parent=1 // pred_check
      _
    $region15: #{tpu_custom_call.1} parent=1 // pred_check_branch
      %22 = sbr.rel (0) target = $region17
    $region16: #{tpu_custom_call.1} parent=1 // pred_region
      _
    $region17: #{tpu_custom_call.1} parent=1 // pred_fallthru
      _
    // Predicated region
    $region18: #{tpu_custom_call.1} parent=1 // pred_check
      _
    $region19: #{tpu_custom_call.1} parent=1 // pred_check_branch
      %24 = sbr.rel (0) target = $region21
    $region20: #{tpu_custom_call.1} parent=1 // pred_region
      _
    $region21: #{tpu_custom_call.1} parent=1 // pred_fallthru
      _
    // Predicated region
    $region22: #{tpu_custom_call.1} parent=1 // pred_check
      _
    $region23: #{tpu_custom_call.1} parent=1 // pred_check_branch
      %26 = sbr.rel (0) target = $region25
    $region24: #{tpu_custom_call.1} parent=1 // pred_region
      _
    $region25: #{tpu_custom_call.1} parent=1 // pred_fallthru
      _
    // Predicated region
    $region26: #{tpu_custom_call.1} parent=1 // pred_check
      _
    $region27: #{tpu_custom_call.1} parent=1 // pred_check_branch
      %28 = sbr.rel (0) target = $region29
    $region28: #{tpu_custom_call.1} parent=1 // pred_region
      _
    $region29: #{tpu_custom_call.1} parent=1 // pred_fallthru
      _
    // Predicated region
    $region30: #{tpu_custom_call.1} parent=1 // pred_check
      _
    $region31: #{tpu_custom_call.1} parent=1 // pred_check_branch
      %30 = sbr.rel (0) target = $region33
    $region32: #{tpu_custom_call.1} parent=1 // pred_region
      _
    $region33: #{tpu_custom_call.1} parent=1 // pred_fallthru
      _
    // Predicated region
    $region34: #{tpu_custom_call.1} parent=1 // pred_check
      _
    $region35: #{tpu_custom_call.1} parent=1 // pred_check_branch
      %32 = sbr.rel (0) target = $region37
    $region36: #{tpu_custom_call.1} parent=1 // pred_region
      _
    $region37: #{tpu_custom_call.1} parent=1 // pred_fallthru
      _
    %v33 = vld [vmem:[%s0] sm:$0xff]
    %v34 = vld [vmem:[%s0 + $0x8] sm:$0xff]
    %v35 = vld [vmem:[%s1] sm:$0xff]
    %v36 = vld [vmem:[%s1 + $0x8] sm:$0xff]
    %v37 = vld [vmem:[%s7] sm:$0x1]
    %v38 = vld [vmem:[%s7 + $0x1] sm:$0x1]
    %v39 = vld [vmem:[%s7 + $0x2] sm:$0x1]
    %v40 = vld [vmem:[%s7 + $0x3] sm:$0x1]
    %v41 = vld [vmem:[%s7 + $0x4] sm:$0x1]
    %v42 = vld [vmem:[%s7 + $0x5] sm:$0x1]
    %vm43 = vcmask 261120
    %v44 = vsel %vm43, %v33, 0.0
    %45 = vadd.xlane.f32.xlu0 %v44
    %v46 = vpop.xlane.xlu0 %45
    %v47 = vsel %vm43, %v34, 0.0
    %48 = vadd.xlane.f32.xlu0 %v47
    %v49 = vpop.xlane.xlu0 %48
    %v50 = vrcp.pop 32.0
    %v51 = vmul.f32 %v46, %v50
    %v52 = vmul.f32 %v49, %v50
    %v53 = vsub.f32 %v33, %v51
    %v54 = vsub.f32 %v34, %v52
    %v55 = vmul.f32 %v53, %v53
    %v56 = vmul.f32 %v54, %v54
    %v57 = vsel %vm43, %v55, 0.0
    %58 = vadd.xlane.f32.xlu0 %v57
    %v59 = vpop.xlane.xlu0 %58
    %v60 = vsel %vm43, %v56, 0.0
    %61 = vadd.xlane.f32.xlu0 %v60
    %v62 = vpop.xlane.xlu0 %61
    %v63 = vmul.f32 %v59, 0.032258064
    %v64 = vmul.f32 %v62, 0.032258064
    %v65 = vrsqrt.pop %v63
    %v66 = vmul.f32 %v63, %v65
    %vm67 = vcmp.eq.f32.partialorder %v63, inf
    %v68 = vsel %vm67, %v63, %v66
    %vm69 = vcmp.eq.f32.partialorder %v63, 0.0
    %v70 = vand.u32 %v63, 2147483648
    %v71 = vsel %vm69, %v70, %v68
    %v72 = vrsqrt.pop %v64
    %v73 = vmul.f32 %v64, %v72
    %vm74 = vcmp.eq.f32.partialorder %v64, inf
    %v75 = vsel %vm74, %v64, %v73
    %vm76 = vcmp.eq.f32.partialorder %v64, 0.0
    %v77 = vand.u32 %v64, 2147483648
    %v78 = vsel %vm76, %v77, %v75
    %v79 = vadd.f32 %v71, 1e-06
    %v80 = vadd.f32 %v78, 1e-06
    %v81 = vrcp.pop %v79
    %v82 = vrcp.pop %v80
    %v83 = vmul.f32 %v53, %v81
    %v84 = vmul.f32 %v54, %v82
    %v85 = vlaneseq
    %v86 = vshrl.u32 %v85, 7
    %v87 = vsub.s32 0, %v86
    %v88 = vrot.slane %v37, %v87
    %v89 = vmul.f32 %v88, %v83
    %v90 = vmul.f32 %v88, %v84
    %v91 = vlaneseq
    %v92 = vshrl.u32 %v91, 7
    %v93 = vsub.s32 0, %v92
    %v94 = vrot.slane %v38, %v93
    %v95 = vadd.f32 %v89, %v94
    %v96 = vadd.f32 %v90, %v94
    %v97 = vld [vmem:[%s2] sm:$0xff]
    %v98 = vld [vmem:[%s2 + $0x8] sm:$0xff]
    %v99 = vld [vmem:[%s2 + $0x10] sm:$0xff]
    %v100 = vld [vmem:[%s2 + $0x18] sm:$0xff]
    %v101 = vld [vmem:[%s2 + $0x20] sm:$0xff]
    %v102 = vld [vmem:[%s2 + $0x28] sm:$0xff]
    %v103 = vld [vmem:[%s2 + $0x30] sm:$0xff]
    %v104 = vld [vmem:[%s2 + $0x38] sm:$0xff]
    %v105 = vld [vmem:[%s2 + $0x40] sm:$0xff]
    %v106 = vld [vmem:[%s2 + $0x48] sm:$0xff]
    %v107 = vld [vmem:[%s2 + $0x50] sm:$0xff]
    %v108 = vld [vmem:[%s2 + $0x58] sm:$0xff]
    %v109 = vld [vmem:[%s3] sm:$0xff]
    %v110 = vld [vmem:[%s3 + $0x8] sm:$0xff]
    %v111 = vld [vmem:[%s3 + $0x10] sm:$0xff]
    %v112 = vld [vmem:[%s3 + $0x18] sm:$0xff]
    %v113 = vld [vmem:[%s3 + $0x20] sm:$0xff]
    %v114 = vld [vmem:[%s3 + $0x28] sm:$0xff]
    %v115 = vld [vmem:[%s3 + $0x30] sm:$0xff]
    %v116 = vld [vmem:[%s3 + $0x38] sm:$0xff]
    %v117 = vld [vmem:[%s3 + $0x40] sm:$0xff]
    %v118 = vld [vmem:[%s3 + $0x48] sm:$0xff]
    %v119 = vld [vmem:[%s3 + $0x50] sm:$0xff]
    %v120 = vld [vmem:[%s3 + $0x58] sm:$0xff]
    %122 = vset.pattern.permute.xlu0 0
    %123 = vperm.xlu0 %122, %v109
    %v124 = vpop.permute.xlu0 %123
    %127 = vset.pattern.permute.xlu0 0
    %128 = vperm.xlu0 %127, %v110
    %v129 = vpop.permute.xlu0 %128
    %132 = vset.pattern.permute.xlu0 0
    %133 = vperm.xlu0 %132, %v111
    %v134 = vpop.permute.xlu0 %133
    %137 = vset.pattern.permute.xlu0 0
    %138 = vperm.xlu0 %137, %v112
    %v139 = vpop.permute.xlu0 %138
    %142 = vset.pattern.permute.xlu0 0
    %143 = vperm.xlu0 %142, %v113
    %v144 = vpop.permute.xlu0 %143
    %147 = vset.pattern.permute.xlu0 0
    %148 = vperm.xlu0 %147, %v114
    %v149 = vpop.permute.xlu0 %148
    %152 = vset.pattern.permute.xlu0 0
    %153 = vperm.xlu0 %152, %v115
    %v154 = vpop.permute.xlu0 %153
    %157 = vset.pattern.permute.xlu0 0
    %158 = vperm.xlu0 %157, %v116
    %v159 = vpop.permute.xlu0 %158
    %162 = vset.pattern.permute.xlu0 0
    %163 = vperm.xlu0 %162, %v117
    %v164 = vpop.permute.xlu0 %163
    %167 = vset.pattern.permute.xlu0 0
    %168 = vperm.xlu0 %167, %v118
    %v169 = vpop.permute.xlu0 %168
    %172 = vset.pattern.permute.xlu0 0
    %173 = vperm.xlu0 %172, %v119
    %v174 = vpop.permute.xlu0 %173
    %177 = vset.pattern.permute.xlu0 0
    %178 = vperm.xlu0 %177, %v120
    %v179 = vpop.permute.xlu0 %178
    %v182 = vsel %vm43, %v97, 0
    %v185 = vsel %vm43, %v98, 0
    %v188 = vsel %vm43, %v99, 0
    %v191 = vsel %vm43, %v100, 0
    %v194 = vsel %vm43, %v101, 0
    %v197 = vsel %vm43, %v102, 0
    %v200 = vsel %vm43, %v103, 0
    %v203 = vsel %vm43, %v104, 0
    %v206 = vsel %vm43, %v105, 0
    %v209 = vsel %vm43, %v106, 0
    %v212 = vsel %vm43, %v107, 0
    %v215 = vsel %vm43, %v108, 0
    %v218 = vsel %vm43, %v95, 0
    %v221 = vsel %vm43, %v96, 0
    %223 = vmatprep.subr.mxu0 0.0
    %224 = vmatpush1.xpose.msra.mxu0 0.0
    %225 = vmatprep.subr.mxu0 0.0
    %226 = vmatpush1.xpose.msra.mxu0 0.0
    %227 = vmatprep.subr.mxu0 0.0
    %228 = vmatpush1.xpose.msra.mxu0 0.0
    %229 = vmatprep.subr.mxu0 0.0
    %230 = vmatpush1.xpose.msra.mxu0 0.0
    %231 = vmatprep.subr.mxu0 0.0
    %232 = vmatpush1.xpose.msra.mxu0 0.0
    %233 = vmatprep.subr.mxu0 0.0
    %234 = vmatpush1.xpose.msra.mxu0 0.0
    %235 = vmatprep.subr.mxu0 0.0
    %236 = vmatpush1.xpose.msra.mxu0 0.0
    %237 = vmatprep.subr.mxu0 0.0
    %238 = vmatpush1.xpose.msra.mxu0 0.0
    %239 = vmatprep.subr.mxu0 0.0
    %240 = vmatpush1.xpose.msra.mxu0 0.0
    %241 = vmatprep.subr.mxu0 0.0
    %242 = vmatpush1.xpose.msra.mxu0 0.0
    %243 = vmatprep.subr.mxu0 0.0
    %244 = vmatpush1.xpose.msra.mxu0 0.0
    %245 = vmatprep.subr.mxu0 0.0
    %246 = vmatpush1.xpose.msra.mxu0 0.0
    %247 = vmatprep.subr.mxu0 0.0
    %248 = vmatpush1.xpose.msra.mxu0 0.0
    %249 = vmatprep.subr.mxu0 0.0
    %250 = vmatpush1.xpose.msra.mxu0 0.0
    %251 = vmatprep.subr.mxu0 0.0
    %252 = vmatpush1.xpose.msra.mxu0 %v221
    %253 = vmatprep.subr.mxu0 0.0
    %254 = vmatpush1.xpose.msra.mxu0 %v218
    %255 = vmatprep.subr.mxu0 0.0
    %256 = vmatpush2.xpose.msra.mxu0 0.0
    %257 = vmatprep.subr.mxu0 0.0
    %258 = vmatpush2.xpose.msra.mxu0 0.0
    %259 = vmatprep.subr.mxu0 0.0
    %260 = vmatpush2.xpose.msra.mxu0 0.0
    %261 = vmatprep.subr.mxu0 0.0
    %262 = vmatpush2.xpose.msra.mxu0 0.0
    %263 = vmatprep.subr.mxu0 0.0
    %264 = vmatpush2.xpose.msra.mxu0 0.0
    %265 = vmatprep.subr.mxu0 0.0
    %266 = vmatpush2.xpose.msra.mxu0 0.0
    %267 = vmatprep.subr.mxu0 0.0
    %268 = vmatpush2.xpose.msra.mxu0 0.0
    %269 = vmatprep.subr.mxu0 0.0
    %270 = vmatpush2.xpose.msra.mxu0 0.0
    %271 = vmatprep.subr.mxu0 0.0
    %272 = vmatpush2.xpose.msra.mxu0 0.0
    %273 = vmatprep.subr.mxu0 0.0
    %274 = vmatpush2.xpose.msra.mxu0 0.0
    %275 = vmatprep.subr.mxu0 0.0
    %276 = vmatpush2.xpose.msra.mxu0 0.0
    %277 = vmatprep.subr.mxu0 0.0
    %278 = vmatpush2.xpose.msra.mxu0 0.0
    %279 = vmatprep.subr.mxu0 0.0
    %280 = vmatpush2.xpose.msra.mxu0 0.0
    %281 = vmatprep.subr.mxu0 0.0
    %282 = vmatpush2.xpose.msra.mxu0 0.0
    %283 = vmatprep.subr.mxu0 0.0
    %284 = vmatpush2.xpose.msra.mxu0 0.0
    %285 = vmatprep.subr.mxu0 0.0
    %286 = vmatpush2.xpose.msra.mxu0 0.0
    %287 = vmatprep.mubr.f32.mxu0 0.0
    %288 = vmatmul.mubr.f32.gmra.mxu0 %v182
    %v289 = vpop.f32.mrf.mxu0
    %v290 = vadd.f32 %v124, %v289
    %v291 = vpop.f32.mrf.mxu0
    %292 = vmatprep.mubr.f32.mxu0 0.0
    %293 = vmatmul.mubr.f32.gmra.mxu0 %v185
    %v294 = vpop.f32.mrf.mxu0
    %v295 = vadd.f32 %v129, %v294
    %v296 = vpop.f32.mrf.mxu0
    %297 = vmatprep.mubr.f32.mxu0 0.0
    %298 = vmatmul.mubr.f32.gmra.mxu0 %v188
    %v299 = vpop.f32.mrf.mxu0
    %v300 = vadd.f32 %v134, %v299
    %v301 = vpop.f32.mrf.mxu0
    %302 = vmatprep.mubr.f32.mxu0 0.0
    %303 = vmatmul.mubr.f32.gmra.mxu0 %v191
    %v304 = vpop.f32.mrf.mxu0
    %v305 = vadd.f32 %v139, %v304
    %v306 = vpop.f32.mrf.mxu0
    %307 = vmatprep.mubr.f32.mxu0 0.0
    %308 = vmatmul.mubr.f32.gmra.mxu0 %v194
    %v309 = vpop.f32.mrf.mxu0
    %v310 = vadd.f32 %v144, %v309
    %v311 = vpop.f32.mrf.mxu0
    %312 = vmatprep.mubr.f32.mxu0 0.0
    %313 = vmatmul.mubr.f32.gmra.mxu0 %v197
    %v314 = vpop.f32.mrf.mxu0
    %v315 = vadd.f32 %v149, %v314
    %v316 = vpop.f32.mrf.mxu0
    %317 = vmatprep.mubr.f32.mxu0 0.0
    %318 = vmatmul.mubr.f32.gmra.mxu0 %v200
    %v319 = vpop.f32.mrf.mxu0
    %v320 = vadd.f32 %v154, %v319
    %v321 = vpop.f32.mrf.mxu0
    %322 = vmatprep.mubr.f32.mxu0 0.0
    %323 = vmatmul.mubr.f32.gmra.mxu0 %v203
    %v324 = vpop.f32.mrf.mxu0
    %v325 = vadd.f32 %v159, %v324
    %v326 = vpop.f32.mrf.mxu0
    %327 = vmatprep.mubr.f32.mxu0 0.0
    %328 = vmatmul.mubr.f32.gmra.mxu0 %v206
    %v329 = vpop.f32.mrf.mxu0
    %v330 = vadd.f32 %v164, %v329
    %v331 = vpop.f32.mrf.mxu0
    %332 = vmatprep.mubr.f32.mxu0 0.0
    %333 = vmatmul.mubr.f32.gmra.mxu0 %v209
    %v334 = vpop.f32.mrf.mxu0
    %v335 = vadd.f32 %v169, %v334
    %v336 = vpop.f32.mrf.mxu0
    %337 = vmatprep.mubr.f32.mxu0 0.0
    %338 = vmatmul.mubr.f32.gmra.mxu0 %v212
    %v339 = vpop.f32.mrf.mxu0
    %v340 = vadd.f32 %v174, %v339
    %v341 = vpop.f32.mrf.mxu0
    %342 = vmatprep.mubr.f32.mxu0 0.0
    %343 = vmatmul.mubr.f32.gmra.mxu0 %v215
    %v344 = vpop.f32.mrf.mxu0
    %v345 = vadd.f32 %v179, %v344
    %v346 = vpop.f32.mrf.mxu0
    %347 = vdwg.mxu0
    %348 = vxpose.xlu0.b32.start [1/16] %v290, 128
    %349 = vxpose.xlu0.b32.cont [2/16] 0.0, 128
    %350 = vxpose.xlu0.b32.cont [3/16] 0.0, 128
    %351 = vxpose.xlu0.b32.cont [4/16] 0.0, 128
    %352 = vxpose.xlu0.b32.cont [5/16] 0.0, 128
    %353 = vxpose.xlu0.b32.cont [6/16] 0.0, 128
    %354 = vxpose.xlu0.b32.cont [7/16] 0.0, 128
    %355 = vxpose.xlu0.b32.cont [8/16] 0.0, 128
    %356 = vxpose.xlu0.b32.cont [9/16] 0.0, 128
    %357 = vxpose.xlu0.b32.cont [10/16] 0.0, 128
    %358 = vxpose.xlu0.b32.cont [11/16] 0.0, 128
    %359 = vxpose.xlu0.b32.cont [12/16] 0.0, 128
    %360 = vxpose.xlu0.b32.cont [13/16] 0.0, 128
    %361 = vxpose.xlu0.b32.cont [14/16] 0.0, 128
    %362 = vxpose.xlu0.b32.cont [15/16] 0.0, 128
    %363 = vxpose.xlu0.b32.end [16/16] 0.0, 128
    %v364 = vpop.trf.xlu0
    %v365 = vpop.trf.xlu0
    %v366 = vpop.trf.xlu0
    %v367 = vpop.trf.xlu0
    %v368 = vpop.trf.xlu0
    %v369 = vpop.trf.xlu0
    %v370 = vpop.trf.xlu0
    %v371 = vpop.trf.xlu0
    %v372 = vpop.trf.xlu0
    %v373 = vpop.trf.xlu0
    %v374 = vpop.trf.xlu0
    %v375 = vpop.trf.xlu0
    %v376 = vpop.trf.xlu0
    %v377 = vpop.trf.xlu0
    %v378 = vpop.trf.xlu0
    %v379 = vpop.trf.xlu0
    %vm380 = vcmask 64512
    %v382 = vsel %vm380, %v364, 0
    %v385 = vsel %vm380, %v365, 0
    %387 = vmatprep.subr.mxu0 0.0
    %388 = vmatpush1.msra.mxu0 0.0
    %389 = vmatprep.subr.mxu0 0.0
    %390 = vmatpush1.msra.mxu0 0.0
    %391 = vmatprep.subr.mxu0 0.0
    %392 = vmatpush1.msra.mxu0 0.0
    %393 = vmatprep.subr.mxu0 0.0
    %394 = vmatpush1.msra.mxu0 0.0
    %395 = vmatprep.subr.mxu0 0.0
    %396 = vmatpush1.msra.mxu0 0.0
    %397 = vmatprep.subr.mxu0 0.0
    %398 = vmatpush1.msra.mxu0 0.0
    %399 = vmatprep.subr.mxu0 0.0
    %400 = vmatpush1.msra.mxu0 0.0
    %401 = vmatprep.subr.mxu0 0.0
    %402 = vmatpush1.msra.mxu0 0.0
    %403 = vmatprep.subr.mxu0 0.0
    %404 = vmatpush1.msra.mxu0 0.0
    %405 = vmatprep.subr.mxu0 0.0
    %406 = vmatpush1.msra.mxu0 0.0
    %407 = vmatprep.subr.mxu0 0.0
    %408 = vmatpush1.msra.mxu0 0.0
    %409 = vmatprep.subr.mxu0 0.0
    %410 = vmatpush1.msra.mxu0 0.0
    %411 = vmatprep.subr.mxu0 0.0
    %412 = vmatpush1.msra.mxu0 0.0
    %413 = vmatprep.subr.mxu0 0.0
    %414 = vmatpush1.msra.mxu0 0.0
    %415 = vmatprep.subr.mxu0 0.0
    %416 = vmatpush1.msra.mxu0 0.0
    %417 = vmatprep.subr.mxu0 0.0
    %418 = vmatpush1.msra.mxu0 %v310
    %419 = vmatprep.subr.mxu0 0.0
    %420 = vmatpush2.msra.mxu0 0.0
    %421 = vmatprep.subr.mxu0 0.0
    %422 = vmatpush2.msra.mxu0 0.0
    %423 = vmatprep.subr.mxu0 0.0
    %424 = vmatpush2.msra.mxu0 0.0
    %425 = vmatprep.subr.mxu0 0.0
    %426 = vmatpush2.msra.mxu0 0.0
    %427 = vmatprep.subr.mxu0 0.0
    %428 = vmatpush2.msra.mxu0 0.0
    %429 = vmatprep.subr.mxu0 0.0
    %430 = vmatpush2.msra.mxu0 0.0
    %431 = vmatprep.subr.mxu0 0.0
    %432 = vmatpush2.msra.mxu0 0.0
    %433 = vmatprep.subr.mxu0 0.0
    %434 = vmatpush2.msra.mxu0 0.0
    %435 = vmatprep.subr.mxu0 0.0
    %436 = vmatpush2.msra.mxu0 0.0
    %437 = vmatprep.subr.mxu0 0.0
    %438 = vmatpush2.msra.mxu0 0.0
    %439 = vmatprep.subr.mxu0 0.0
    %440 = vmatpush2.msra.mxu0 0.0
    %441 = vmatprep.subr.mxu0 0.0
    %442 = vmatpush2.msra.mxu0 0.0
    %443 = vmatprep.subr.mxu0 0.0
    %444 = vmatpush2.msra.mxu0 0.0
    %445 = vmatprep.subr.mxu0 0.0
    %446 = vmatpush2.msra.mxu0 0.0
    %447 = vmatprep.subr.mxu0 0.0
    %448 = vmatpush2.msra.mxu0 0.0
    %449 = vmatprep.subr.mxu0 0.0
    %450 = vmatpush2.msra.mxu0 0.0
    %451 = vmatprep.mubr.f32.mxu0 0.0
    %452 = vmatmul.mubr.f32.gmra.mxu0 %v382
    %v453 = vpop.f32.mrf.mxu0
    %v454 = vadd.f32 %v35, %v453
    %v455 = vpop.f32.mrf.mxu0
    %456 = vmatprep.mubr.f32.mxu0 0.0
    %457 = vmatmul.mubr.f32.gmra.mxu0 %v385
    %v458 = vpop.f32.mrf.mxu0
    %v459 = vadd.f32 %v36, %v458
    %v460 = vpop.f32.mrf.mxu0
    %461 = vdwg.mxu0
    %vm462 = vcmask 130048
    %v463 = vsel %vm462, %v454, -inf
    %464 = vmax.xlane.f32.xlu0 %v463
    %v465 = vpop.xlane.xlu0 %464
    %v466 = vsel %vm462, %v459, -inf
    %467 = vmax.xlane.f32.xlu0 %v466
    %v468 = vpop.xlane.xlu0 %467
    %v469 = vsub.f32 %v454, %v465
    %v470 = vsub.f32 %v459, %v468
    %v471 = vmul.f32 %v469, 1.442695
    %v472 = vpow.pop %v471
    %v473 = vmul.f32 %v470, 1.442695
    %v474 = vpow.pop %v473
    %v475 = vsel %vm462, %v472, 0.0
    %476 = vadd.xlane.f32.xlu0 %v475
    %v477 = vpop.xlane.xlu0 %476
    %v478 = vsel %vm462, %v474, 0.0
    %479 = vadd.xlane.f32.xlu0 %v478
    %v480 = vpop.xlane.xlu0 %479
    %v481 = vrcp.pop %v477
    %v482 = vrcp.pop %v480
    %v483 = vmul.f32 %v472, %v481
    %v484 = vmul.f32 %v474, %v482
    %v486 = vsel %vm462, %v483, 0
    %v489 = vsel %vm462, %v484, 0
    %v492 = vsel %vm462, %v330, 0
    %494 = vmatprep.subr.mxu0 0.0
    %495 = vmatpush1.xpose.msra.mxu0 0.0
    %496 = vmatprep.subr.mxu0 0.0
    %497 = vmatpush1.xpose.msra.mxu0 0.0
    %498 = vmatprep.subr.mxu0 0.0
    %499 = vmatpush1.xpose.msra.mxu0 0.0
    %500 = vmatprep.subr.mxu0 0.0
    %501 = vmatpush1.xpose.msra.mxu0 0.0
    %502 = vmatprep.subr.mxu0 0.0
    %503 = vmatpush1.xpose.msra.mxu0 0.0
    %504 = vmatprep.subr.mxu0 0.0
    %505 = vmatpush1.xpose.msra.mxu0 0.0
    %506 = vmatprep.subr.mxu0 0.0
    %507 = vmatpush1.xpose.msra.mxu0 0.0
    %508 = vmatprep.subr.mxu0 0.0
    %509 = vmatpush1.xpose.msra.mxu0 0.0
    %510 = vmatprep.subr.mxu0 0.0
    %511 = vmatpush1.xpose.msra.mxu0 0.0
    %512 = vmatprep.subr.mxu0 0.0
    %513 = vmatpush1.xpose.msra.mxu0 0.0
    %514 = vmatprep.subr.mxu0 0.0
    %515 = vmatpush1.xpose.msra.mxu0 0.0
    %516 = vmatprep.subr.mxu0 0.0
    %517 = vmatpush1.xpose.msra.mxu0 0.0
    %518 = vmatprep.subr.mxu0 0.0
    %519 = vmatpush1.xpose.msra.mxu0 0.0
    %520 = vmatprep.subr.mxu0 0.0
    %521 = vmatpush1.xpose.msra.mxu0 0.0
    %522 = vmatprep.subr.mxu0 0.0
    %523 = vmatpush1.xpose.msra.mxu0 0.0
    %524 = vmatprep.subr.mxu0 0.0
    %525 = vmatpush1.xpose.msra.mxu0 %v492
    %526 = vmatprep.subr.mxu0 0.0
    %527 = vmatpush2.xpose.msra.mxu0 0.0
    %528 = vmatprep.subr.mxu0 0.0
    %529 = vmatpush2.xpose.msra.mxu0 0.0
    %530 = vmatprep.subr.mxu0 0.0
    %531 = vmatpush2.xpose.msra.mxu0 0.0
    %532 = vmatprep.subr.mxu0 0.0
    %533 = vmatpush2.xpose.msra.mxu0 0.0
    %534 = vmatprep.subr.mxu0 0.0
    %535 = vmatpush2.xpose.msra.mxu0 0.0
    %536 = vmatprep.subr.mxu0 0.0
    %537 = vmatpush2.xpose.msra.mxu0 0.0
    %538 = vmatprep.subr.mxu0 0.0
    %539 = vmatpush2.xpose.msra.mxu0 0.0
    %540 = vmatprep.subr.mxu0 0.0
    %541 = vmatpush2.xpose.msra.mxu0 0.0
    %542 = vmatprep.subr.mxu0 0.0
    %543 = vmatpush2.xpose.msra.mxu0 0.0
    %544 = vmatprep.subr.mxu0 0.0
    %545 = vmatpush2.xpose.msra.mxu0 0.0
    %546 = vmatprep.subr.mxu0 0.0
    %547 = vmatpush2.xpose.msra.mxu0 0.0
    %548 = vmatprep.subr.mxu0 0.0
    %549 = vmatpush2.xpose.msra.mxu0 0.0
    %550 = vmatprep.subr.mxu0 0.0
    %551 = vmatpush2.xpose.msra.mxu0 0.0
    %552 = vmatprep.subr.mxu0 0.0
    %553 = vmatpush2.xpose.msra.mxu0 0.0
    %554 = vmatprep.subr.mxu0 0.0
    %555 = vmatpush2.xpose.msra.mxu0 0.0
    %556 = vmatprep.subr.mxu0 0.0
    %557 = vmatpush2.xpose.msra.mxu0 0.0
    %558 = vmatprep.mubr.f32.mxu0 0.0
    %559 = vmatmul.mubr.f32.gmra.mxu0 %v486
    %v560 = vpop.f32.mrf.mxu0
    %v561 = vadd.f32 0.0, %v560
    %v562 = vpop.f32.mrf.mxu0
    %563 = vmatprep.mubr.f32.mxu0 0.0
    %564 = vmatmul.mubr.f32.gmra.mxu0 %v489
    %v565 = vpop.f32.mrf.mxu0
    %v566 = vadd.f32 0.0, %v565
    %v567 = vpop.f32.mrf.mxu0
    %568 = vdwg.mxu0
    %v569 = vld [vmem:[%s4] sm:$0xff]
    %570 = vxpose.xlu0.b32.start [1/16] %v295, 128
    %571 = vxpose.xlu0.b32.cont [2/16] 0.0, 128
    %572 = vxpose.xlu0.b32.cont [3/16] 0.0, 128
    %573 = vxpose.xlu0.b32.cont [4/16] 0.0, 128
    %574 = vxpose.xlu0.b32.cont [5/16] 0.0, 128
    %575 = vxpose.xlu0.b32.cont [6/16] 0.0, 128
    %576 = vxpose.xlu0.b32.cont [7/16] 0.0, 128
    %577 = vxpose.xlu0.b32.cont [8/16] 0.0, 128
    %578 = vxpose.xlu0.b32.cont [9/16] 0.0, 128
    %579 = vxpose.xlu0.b32.cont [10/16] 0.0, 128
    %580 = vxpose.xlu0.b32.cont [11/16] 0.0, 128
    %581 = vxpose.xlu0.b32.cont [12/16] 0.0, 128
    %582 = vxpose.xlu0.b32.cont [13/16] 0.0, 128
    %583 = vxpose.xlu0.b32.cont [14/16] 0.0, 128
    %584 = vxpose.xlu0.b32.cont [15/16] 0.0, 128
    %585 = vxpose.xlu0.b32.end [16/16] 0.0, 128
    %v586 = vpop.trf.xlu0
    %v587 = vpop.trf.xlu0
    %v588 = vpop.trf.xlu0
    %v589 = vpop.trf.xlu0
    %v590 = vpop.trf.xlu0
    %v591 = vpop.trf.xlu0
    %v592 = vpop.trf.xlu0
    %v593 = vpop.trf.xlu0
    %v594 = vpop.trf.xlu0
    %v595 = vpop.trf.xlu0
    %v596 = vpop.trf.xlu0
    %v597 = vpop.trf.xlu0
    %v598 = vpop.trf.xlu0
    %v599 = vpop.trf.xlu0
    %v600 = vpop.trf.xlu0
    %v601 = vpop.trf.xlu0
    %v603 = vsel %vm380, %v586, 0
    %v606 = vsel %vm380, %v587, 0
    %608 = vmatprep.subr.mxu0 0.0
    %609 = vmatpush1.msra.mxu0 0.0
    %610 = vmatprep.subr.mxu0 0.0
    %611 = vmatpush1.msra.mxu0 0.0
    %612 = vmatprep.subr.mxu0 0.0
    %613 = vmatpush1.msra.mxu0 0.0
    %614 = vmatprep.subr.mxu0 0.0
    %615 = vmatpush1.msra.mxu0 0.0
    %616 = vmatprep.subr.mxu0 0.0
    %617 = vmatpush1.msra.mxu0 0.0
    %618 = vmatprep.subr.mxu0 0.0
    %619 = vmatpush1.msra.mxu0 0.0
    %620 = vmatprep.subr.mxu0 0.0
    %621 = vmatpush1.msra.mxu0 0.0
    %622 = vmatprep.subr.mxu0 0.0
    %623 = vmatpush1.msra.mxu0 0.0
    %624 = vmatprep.subr.mxu0 0.0
    %625 = vmatpush1.msra.mxu0 0.0
    %626 = vmatprep.subr.mxu0 0.0
    %627 = vmatpush1.msra.mxu0 0.0
    %628 = vmatprep.subr.mxu0 0.0
    %629 = vmatpush1.msra.mxu0 0.0
    %630 = vmatprep.subr.mxu0 0.0
    %631 = vmatpush1.msra.mxu0 0.0
    %632 = vmatprep.subr.mxu0 0.0
    %633 = vmatpush1.msra.mxu0 0.0
    %634 = vmatprep.subr.mxu0 0.0
    %635 = vmatpush1.msra.mxu0 0.0
    %636 = vmatprep.subr.mxu0 0.0
    %637 = vmatpush1.msra.mxu0 0.0
    %638 = vmatprep.subr.mxu0 0.0
    %639 = vmatpush1.msra.mxu0 %v315
    %640 = vmatprep.subr.mxu0 0.0
    %641 = vmatpush2.msra.mxu0 0.0
    %642 = vmatprep.subr.mxu0 0.0
    %643 = vmatpush2.msra.mxu0 0.0
    %644 = vmatprep.subr.mxu0 0.0
    %645 = vmatpush2.msra.mxu0 0.0
    %646 = vmatprep.subr.mxu0 0.0
    %647 = vmatpush2.msra.mxu0 0.0
    %648 = vmatprep.subr.mxu0 0.0
    %649 = vmatpush2.msra.mxu0 0.0
    %650 = vmatprep.subr.mxu0 0.0
    %651 = vmatpush2.msra.mxu0 0.0
    %652 = vmatprep.subr.mxu0 0.0
    %653 = vmatpush2.msra.mxu0 0.0
    %654 = vmatprep.subr.mxu0 0.0
    %655 = vmatpush2.msra.mxu0 0.0
    %656 = vmatprep.subr.mxu0 0.0
    %657 = vmatpush2.msra.mxu0 0.0
    %658 = vmatprep.subr.mxu0 0.0
    %659 = vmatpush2.msra.mxu0 0.0
    %660 = vmatprep.subr.mxu0 0.0
    %661 = vmatpush2.msra.mxu0 0.0
    %662 = vmatprep.subr.mxu0 0.0
    %663 = vmatpush2.msra.mxu0 0.0
    %664 = vmatprep.subr.mxu0 0.0
    %665 = vmatpush2.msra.mxu0 0.0
    %666 = vmatprep.subr.mxu0 0.0
    %667 = vmatpush2.msra.mxu0 0.0
    %668 = vmatprep.subr.mxu0 0.0
    %669 = vmatpush2.msra.mxu0 0.0
    %670 = vmatprep.subr.mxu0 0.0
    %671 = vmatpush2.msra.mxu0 0.0
    %672 = vmatprep.mubr.f32.mxu0 0.0
    %673 = vmatmul.mubr.f32.gmra.mxu0 %v603
    %v674 = vpop.f32.mrf.mxu0
    %v675 = vadd.f32 %v35, %v674
    %v676 = vpop.f32.mrf.mxu0
    %677 = vmatprep.mubr.f32.mxu0 0.0
    %678 = vmatmul.mubr.f32.gmra.mxu0 %v606
    %v679 = vpop.f32.mrf.mxu0
    %v680 = vadd.f32 %v36, %v679
    %v681 = vpop.f32.mrf.mxu0
    %682 = vdwg.mxu0
    %v683 = vsel %vm462, %v675, -inf
    %684 = vmax.xlane.f32.xlu0 %v683
    %v685 = vpop.xlane.xlu0 %684
    %v686 = vsel %vm462, %v680, -inf
    %687 = vmax.xlane.f32.xlu0 %v686
    %v688 = vpop.xlane.xlu0 %687
    %v689 = vsub.f32 %v675, %v685
    %v690 = vsub.f32 %v680, %v688
    %v691 = vmul.f32 %v689, 1.442695
    %v692 = vpow.pop %v691
    %v693 = vmul.f32 %v690, 1.442695
    %v694 = vpow.pop %v693
    %v695 = vsel %vm462, %v692, 0.0
    %696 = vadd.xlane.f32.xlu0 %v695
    %v697 = vpop.xlane.xlu0 %696
    %v698 = vsel %vm462, %v694, 0.0
    %699 = vadd.xlane.f32.xlu0 %v698
    %v700 = vpop.xlane.xlu0 %699
    %v701 = vrcp.pop %v697
    %v702 = vrcp.pop %v700
    %v703 = vmul.f32 %v692, %v701
    %v704 = vmul.f32 %v694, %v702
    %v706 = vsel %vm462, %v703, 0
    %v709 = vsel %vm462, %v704, 0
    %v712 = vsel %vm462, %v335, 0
    %714 = vmatprep.subr.mxu0 0.0
    %715 = vmatpush1.xpose.msra.mxu0 0.0
    %716 = vmatprep.subr.mxu0 0.0
    %717 = vmatpush1.xpose.msra.mxu0 0.0
    %718 = vmatprep.subr.mxu0 0.0
    %719 = vmatpush1.xpose.msra.mxu0 0.0
    %720 = vmatprep.subr.mxu0 0.0
    %721 = vmatpush1.xpose.msra.mxu0 0.0
    %722 = vmatprep.subr.mxu0 0.0
    %723 = vmatpush1.xpose.msra.mxu0 0.0
    %724 = vmatprep.subr.mxu0 0.0
    %725 = vmatpush1.xpose.msra.mxu0 0.0
    %726 = vmatprep.subr.mxu0 0.0
    %727 = vmatpush1.xpose.msra.mxu0 0.0
    %728 = vmatprep.subr.mxu0 0.0
    %729 = vmatpush1.xpose.msra.mxu0 0.0
    %730 = vmatprep.subr.mxu0 0.0
    %731 = vmatpush1.xpose.msra.mxu0 0.0
    %732 = vmatprep.subr.mxu0 0.0
    %733 = vmatpush1.xpose.msra.mxu0 0.0
    %734 = vmatprep.subr.mxu0 0.0
    %735 = vmatpush1.xpose.msra.mxu0 0.0
    %736 = vmatprep.subr.mxu0 0.0
    %737 = vmatpush1.xpose.msra.mxu0 0.0
    %738 = vmatprep.subr.mxu0 0.0
    %739 = vmatpush1.xpose.msra.mxu0 0.0
    %740 = vmatprep.subr.mxu0 0.0
    %741 = vmatpush1.xpose.msra.mxu0 0.0
    %742 = vmatprep.subr.mxu0 0.0
    %743 = vmatpush1.xpose.msra.mxu0 0.0
    %744 = vmatprep.subr.mxu0 0.0
    %745 = vmatpush1.xpose.msra.mxu0 %v712
    %746 = vmatprep.subr.mxu0 0.0
    %747 = vmatpush2.xpose.msra.mxu0 0.0
    %748 = vmatprep.subr.mxu0 0.0
    %749 = vmatpush2.xpose.msra.mxu0 0.0
    %750 = vmatprep.subr.mxu0 0.0
    %751 = vmatpush2.xpose.msra.mxu0 0.0
    %752 = vmatprep.subr.mxu0 0.0
    %753 = vmatpush2.xpose.msra.mxu0 0.0
    %754 = vmatprep.subr.mxu0 0.0
    %755 = vmatpush2.xpose.msra.mxu0 0.0
    %756 = vmatprep.subr.mxu0 0.0
    %757 = vmatpush2.xpose.msra.mxu0 0.0
    %758 = vmatprep.subr.mxu0 0.0
    %759 = vmatpush2.xpose.msra.mxu0 0.0
    %760 = vmatprep.subr.mxu0 0.0
    %761 = vmatpush2.xpose.msra.mxu0 0.0
    %762 = vmatprep.subr.mxu0 0.0
    %763 = vmatpush2.xpose.msra.mxu0 0.0
    %764 = vmatprep.subr.mxu0 0.0
    %765 = vmatpush2.xpose.msra.mxu0 0.0
    %766 = vmatprep.subr.mxu0 0.0
    %767 = vmatpush2.xpose.msra.mxu0 0.0
    %768 = vmatprep.subr.mxu0 0.0
    %769 = vmatpush2.xpose.msra.mxu0 0.0
    %770 = vmatprep.subr.mxu0 0.0
    %771 = vmatpush2.xpose.msra.mxu0 0.0
    %772 = vmatprep.subr.mxu0 0.0
    %773 = vmatpush2.xpose.msra.mxu0 0.0
    %774 = vmatprep.subr.mxu0 0.0
    %775 = vmatpush2.xpose.msra.mxu0 0.0
    %776 = vmatprep.subr.mxu0 0.0
    %777 = vmatpush2.xpose.msra.mxu0 0.0
    %778 = vmatprep.mubr.f32.mxu0 0.0
    %779 = vmatmul.mubr.f32.gmra.mxu0 %v706
    %v780 = vpop.f32.mrf.mxu0
    %v781 = vadd.f32 0.0, %v780
    %v782 = vpop.f32.mrf.mxu0
    %783 = vmatprep.mubr.f32.mxu0 0.0
    %784 = vmatmul.mubr.f32.gmra.mxu0 %v709
    %v785 = vpop.f32.mrf.mxu0
    %v786 = vadd.f32 0.0, %v785
    %v787 = vpop.f32.mrf.mxu0
    %788 = vdwg.mxu0
    %v789 = vld [vmem:[%s4 + $0x8] sm:$0xff]
    %v791 = vsel %vm380, %v781, 0
    %v794 = vsel %vm380, %v786, 0
    %796 = vmatprep.subr.mxu0 0.0
    %797 = vmatpush1.msra.mxu0 0.0
    %798 = vmatprep.subr.mxu0 0.0
    %799 = vmatpush1.msra.mxu0 0.0
    %800 = vmatprep.subr.mxu0 0.0
    %801 = vmatpush1.msra.mxu0 0.0
    %802 = vmatprep.subr.mxu0 0.0
    %803 = vmatpush1.msra.mxu0 0.0
    %804 = vmatprep.subr.mxu0 0.0
    %805 = vmatpush1.msra.mxu0 0.0
    %806 = vmatprep.subr.mxu0 0.0
    %807 = vmatpush1.msra.mxu0 0.0
    %808 = vmatprep.subr.mxu0 0.0
    %809 = vmatpush1.msra.mxu0 0.0
    %810 = vmatprep.subr.mxu0 0.0
    %811 = vmatpush1.msra.mxu0 0.0
    %812 = vmatprep.subr.mxu0 0.0
    %813 = vmatpush1.msra.mxu0 0.0
    %814 = vmatprep.subr.mxu0 0.0
    %815 = vmatpush1.msra.mxu0 0.0
    %816 = vmatprep.subr.mxu0 0.0
    %817 = vmatpush1.msra.mxu0 0.0
    %818 = vmatprep.subr.mxu0 0.0
    %819 = vmatpush1.msra.mxu0 0.0
    %820 = vmatprep.subr.mxu0 0.0
    %821 = vmatpush1.msra.mxu0 0.0
    %822 = vmatprep.subr.mxu0 0.0
    %823 = vmatpush1.msra.mxu0 0.0
    %824 = vmatprep.subr.mxu0 0.0
    %825 = vmatpush1.msra.mxu0 0.0
    %826 = vmatprep.subr.mxu0 0.0
    %827 = vmatpush1.msra.mxu0 %v789
    %828 = vmatprep.subr.mxu0 0.0
    %829 = vmatpush2.msra.mxu0 0.0
    %830 = vmatprep.subr.mxu0 0.0
    %831 = vmatpush2.msra.mxu0 0.0
    %832 = vmatprep.subr.mxu0 0.0
    %833 = vmatpush2.msra.mxu0 0.0
    %834 = vmatprep.subr.mxu0 0.0
    %835 = vmatpush2.msra.mxu0 0.0
    %836 = vmatprep.subr.mxu0 0.0
    %837 = vmatpush2.msra.mxu0 0.0
    %838 = vmatprep.subr.mxu0 0.0
    %839 = vmatpush2.msra.mxu0 0.0
    %840 = vmatprep.subr.mxu0 0.0
    %841 = vmatpush2.msra.mxu0 0.0
    %842 = vmatprep.subr.mxu0 0.0
    %843 = vmatpush2.msra.mxu0 0.0
    %844 = vmatprep.subr.mxu0 0.0
    %845 = vmatpush2.msra.mxu0 0.0
    %846 = vmatprep.subr.mxu0 0.0
    %847 = vmatpush2.msra.mxu0 0.0
    %848 = vmatprep.subr.mxu0 0.0
    %849 = vmatpush2.msra.mxu0 0.0
    %850 = vmatprep.subr.mxu0 0.0
    %851 = vmatpush2.msra.mxu0 0.0
    %852 = vmatprep.subr.mxu0 0.0
    %853 = vmatpush2.msra.mxu0 0.0
    %854 = vmatprep.subr.mxu0 0.0
    %855 = vmatpush2.msra.mxu0 0.0
    %856 = vmatprep.subr.mxu0 0.0
    %857 = vmatpush2.msra.mxu0 0.0
    %858 = vmatprep.subr.mxu0 0.0
    %859 = vmatpush2.msra.mxu0 0.0
    %860 = vmatprep.mubr.f32.mxu0 0.0
    %861 = vmatmul.mubr.f32.gmra.mxu0 %v791
    %v862 = vpop.f32.mrf.mxu0
    %v863 = vadd.f32 0.0, %v862
    %v864 = vpop.f32.mrf.mxu0
    %865 = vmatprep.mubr.f32.mxu0 0.0
    %866 = vmatmul.mubr.f32.gmra.mxu0 %v794
    %v867 = vpop.f32.mrf.mxu0
    %v868 = vadd.f32 0.0, %v867
    %v869 = vpop.f32.mrf.mxu0
    %870 = vdwg.mxu0
    %v872 = vsel %vm380, %v561, 0
    %v875 = vsel %vm380, %v566, 0
    %877 = vmatprep.subr.mxu0 0.0
    %878 = vmatpush1.msra.mxu0 0.0
    %879 = vmatprep.subr.mxu0 0.0
    %880 = vmatpush1.msra.mxu0 0.0
    %881 = vmatprep.subr.mxu0 0.0
    %882 = vmatpush1.msra.mxu0 0.0
    %883 = vmatprep.subr.mxu0 0.0
    %884 = vmatpush1.msra.mxu0 0.0
    %885 = vmatprep.subr.mxu0 0.0
    %886 = vmatpush1.msra.mxu0 0.0
    %887 = vmatprep.subr.mxu0 0.0
    %888 = vmatpush1.msra.mxu0 0.0
    %889 = vmatprep.subr.mxu0 0.0
    %890 = vmatpush1.msra.mxu0 0.0
    %891 = vmatprep.subr.mxu0 0.0
    %892 = vmatpush1.msra.mxu0 0.0
    %893 = vmatprep.subr.mxu0 0.0
    %894 = vmatpush1.msra.mxu0 0.0
    %895 = vmatprep.subr.mxu0 0.0
    %896 = vmatpush1.msra.mxu0 0.0
    %897 = vmatprep.subr.mxu0 0.0
    %898 = vmatpush1.msra.mxu0 0.0
    %899 = vmatprep.subr.mxu0 0.0
    %900 = vmatpush1.msra.mxu0 0.0
    %901 = vmatprep.subr.mxu0 0.0
    %902 = vmatpush1.msra.mxu0 0.0
    %903 = vmatprep.subr.mxu0 0.0
    %904 = vmatpush1.msra.mxu0 0.0
    %905 = vmatprep.subr.mxu0 0.0
    %906 = vmatpush1.msra.mxu0 0.0
    %907 = vmatprep.subr.mxu0 0.0
    %908 = vmatpush1.msra.mxu0 %v569
    %909 = vmatprep.subr.mxu0 0.0
    %910 = vmatpush2.msra.mxu0 0.0
    %911 = vmatprep.subr.mxu0 0.0
    %912 = vmatpush2.msra.mxu0 0.0
    %913 = vmatprep.subr.mxu0 0.0
    %914 = vmatpush2.msra.mxu0 0.0
    %915 = vmatprep.subr.mxu0 0.0
    %916 = vmatpush2.msra.mxu0 0.0
    %917 = vmatprep.subr.mxu0 0.0
    %918 = vmatpush2.msra.mxu0 0.0
    %919 = vmatprep.subr.mxu0 0.0
    %920 = vmatpush2.msra.mxu0 0.0
    %921 = vmatprep.subr.mxu0 0.0
    %922 = vmatpush2.msra.mxu0 0.0
    %923 = vmatprep.subr.mxu0 0.0
    %924 = vmatpush2.msra.mxu0 0.0
    %925 = vmatprep.subr.mxu0 0.0
    %926 = vmatpush2.msra.mxu0 0.0
    %927 = vmatprep.subr.mxu0 0.0
    %928 = vmatpush2.msra.mxu0 0.0
    %929 = vmatprep.subr.mxu0 0.0
    %930 = vmatpush2.msra.mxu0 0.0
    %931 = vmatprep.subr.mxu0 0.0
    %932 = vmatpush2.msra.mxu0 0.0
    %933 = vmatprep.subr.mxu0 0.0
    %934 = vmatpush2.msra.mxu0 0.0
    %935 = vmatprep.subr.mxu0 0.0
    %936 = vmatpush2.msra.mxu0 0.0
    %937 = vmatprep.subr.mxu0 0.0
    %938 = vmatpush2.msra.mxu0 0.0
    %939 = vmatprep.subr.mxu0 0.0
    %940 = vmatpush2.msra.mxu0 0.0
    %941 = vmatprep.mubr.f32.mxu0 0.0
    %942 = vmatmul.mubr.f32.gmra.mxu0 %v872
    %v943 = vpop.f32.mrf.mxu0
    %v944 = vadd.f32 %v863, %v943
    %v945 = vpop.f32.mrf.mxu0
    %946 = vmatprep.mubr.f32.mxu0 0.0
    %947 = vmatmul.mubr.f32.gmra.mxu0 %v875
    %v948 = vpop.f32.mrf.mxu0
    %v949 = vadd.f32 %v868, %v948
    %v950 = vpop.f32.mrf.mxu0
    %951 = vdwg.mxu0
    %952 = vxpose.xlu0.b32.start [1/16] %v300, 128
    %953 = vxpose.xlu0.b32.cont [2/16] 0.0, 128
    %954 = vxpose.xlu0.b32.cont [3/16] 0.0, 128
    %955 = vxpose.xlu0.b32.cont [4/16] 0.0, 128
    %956 = vxpose.xlu0.b32.cont [5/16] 0.0, 128
    %957 = vxpose.xlu0.b32.cont [6/16] 0.0, 128
    %958 = vxpose.xlu0.b32.cont [7/16] 0.0, 128
    %959 = vxpose.xlu0.b32.cont [8/16] 0.0, 128
    %960 = vxpose.xlu0.b32.cont [9/16] 0.0, 128
    %961 = vxpose.xlu0.b32.cont [10/16] 0.0, 128
    %962 = vxpose.xlu0.b32.cont [11/16] 0.0, 128
    %963 = vxpose.xlu0.b32.cont [12/16] 0.0, 128
    %964 = vxpose.xlu0.b32.cont [13/16] 0.0, 128
    %965 = vxpose.xlu0.b32.cont [14/16] 0.0, 128
    %966 = vxpose.xlu0.b32.cont [15/16] 0.0, 128
    %967 = vxpose.xlu0.b32.end [16/16] 0.0, 128
    %v968 = vpop.trf.xlu0
    %v969 = vpop.trf.xlu0
    %v970 = vpop.trf.xlu0
    %v971 = vpop.trf.xlu0
    %v972 = vpop.trf.xlu0
    %v973 = vpop.trf.xlu0
    %v974 = vpop.trf.xlu0
    %v975 = vpop.trf.xlu0
    %v976 = vpop.trf.xlu0
    %v977 = vpop.trf.xlu0
    %v978 = vpop.trf.xlu0
    %v979 = vpop.trf.xlu0
    %v980 = vpop.trf.xlu0
    %v981 = vpop.trf.xlu0
    %v982 = vpop.trf.xlu0
    %v983 = vpop.trf.xlu0
    %v985 = vsel %vm380, %v968, 0
    %v988 = vsel %vm380, %v969, 0
    %990 = vmatprep.subr.mxu0 0.0
    %991 = vmatpush1.msra.mxu0 0.0
    %992 = vmatprep.subr.mxu0 0.0
    %993 = vmatpush1.msra.mxu0 0.0
    %994 = vmatprep.subr.mxu0 0.0
    %995 = vmatpush1.msra.mxu0 0.0
    %996 = vmatprep.subr.mxu0 0.0
    %997 = vmatpush1.msra.mxu0 0.0
    %998 = vmatprep.subr.mxu0 0.0
    %999 = vmatpush1.msra.mxu0 0.0
    %1000 = vmatprep.subr.mxu0 0.0
    %1001 = vmatpush1.msra.mxu0 0.0
    %1002 = vmatprep.subr.mxu0 0.0
    %1003 = vmatpush1.msra.mxu0 0.0
    %1004 = vmatprep.subr.mxu0 0.0
    %1005 = vmatpush1.msra.mxu0 0.0
    %1006 = vmatprep.subr.mxu0 0.0
    %1007 = vmatpush1.msra.mxu0 0.0
    %1008 = vmatprep.subr.mxu0 0.0
    %1009 = vmatpush1.msra.mxu0 0.0
    %1010 = vmatprep.subr.mxu0 0.0
    %1011 = vmatpush1.msra.mxu0 0.0
    %1012 = vmatprep.subr.mxu0 0.0
    %1013 = vmatpush1.msra.mxu0 0.0
    %1014 = vmatprep.subr.mxu0 0.0
    %1015 = vmatpush1.msra.mxu0 0.0
    %1016 = vmatprep.subr.mxu0 0.0
    %1017 = vmatpush1.msra.mxu0 0.0
    %1018 = vmatprep.subr.mxu0 0.0
    %1019 = vmatpush1.msra.mxu0 0.0
    %1020 = vmatprep.subr.mxu0 0.0
    %1021 = vmatpush1.msra.mxu0 %v320
    %1022 = vmatprep.subr.mxu0 0.0
    %1023 = vmatpush2.msra.mxu0 0.0
    %1024 = vmatprep.subr.mxu0 0.0
    %1025 = vmatpush2.msra.mxu0 0.0
    %1026 = vmatprep.subr.mxu0 0.0
    %1027 = vmatpush2.msra.mxu0 0.0
    %1028 = vmatprep.subr.mxu0 0.0
    %1029 = vmatpush2.msra.mxu0 0.0
    %1030 = vmatprep.subr.mxu0 0.0
    %1031 = vmatpush2.msra.mxu0 0.0
    %1032 = vmatprep.subr.mxu0 0.0
    %1033 = vmatpush2.msra.mxu0 0.0
    %1034 = vmatprep.subr.mxu0 0.0
    %1035 = vmatpush2.msra.mxu0 0.0
    %1036 = vmatprep.subr.mxu0 0.0
    %1037 = vmatpush2.msra.mxu0 0.0
    %1038 = vmatprep.subr.mxu0 0.0
    %1039 = vmatpush2.msra.mxu0 0.0
    %1040 = vmatprep.subr.mxu0 0.0
    %1041 = vmatpush2.msra.mxu0 0.0
    %1042 = vmatprep.subr.mxu0 0.0
    %1043 = vmatpush2.msra.mxu0 0.0
    %1044 = vmatprep.subr.mxu0 0.0
    %1045 = vmatpush2.msra.mxu0 0.0
    %1046 = vmatprep.subr.mxu0 0.0
    %1047 = vmatpush2.msra.mxu0 0.0
    %1048 = vmatprep.subr.mxu0 0.0
    %1049 = vmatpush2.msra.mxu0 0.0
    %1050 = vmatprep.subr.mxu0 0.0
    %1051 = vmatpush2.msra.mxu0 0.0
    %1052 = vmatprep.subr.mxu0 0.0
    %1053 = vmatpush2.msra.mxu0 0.0
    %1054 = vmatprep.mubr.f32.mxu0 0.0
    %1055 = vmatmul.mubr.f32.gmra.mxu0 %v985
    %v1056 = vpop.f32.mrf.mxu0
    %v1057 = vadd.f32 %v35, %v1056
    %v1058 = vpop.f32.mrf.mxu0
    %1059 = vmatprep.mubr.f32.mxu0 0.0
    %1060 = vmatmul.mubr.f32.gmra.mxu0 %v988
    %v1061 = vpop.f32.mrf.mxu0
    %v1062 = vadd.f32 %v36, %v1061
    %v1063 = vpop.f32.mrf.mxu0
    %1064 = vdwg.mxu0
    %v1065 = vsel %vm462, %v1057, -inf
    %1066 = vmax.xlane.f32.xlu0 %v1065
    %v1067 = vpop.xlane.xlu0 %1066
    %v1068 = vsel %vm462, %v1062, -inf
    %1069 = vmax.xlane.f32.xlu0 %v1068
    %v1070 = vpop.xlane.xlu0 %1069
    %v1071 = vsub.f32 %v1057, %v1067
    %v1072 = vsub.f32 %v1062, %v1070
    %v1073 = vmul.f32 %v1071, 1.442695
    %v1074 = vpow.pop %v1073
    %v1075 = vmul.f32 %v1072, 1.442695
    %v1076 = vpow.pop %v1075
    %v1077 = vsel %vm462, %v1074, 0.0
    %1078 = vadd.xlane.f32.xlu0 %v1077
    %v1079 = vpop.xlane.xlu0 %1078
    %v1080 = vsel %vm462, %v1076, 0.0
    %1081 = vadd.xlane.f32.xlu0 %v1080
    %v1082 = vpop.xlane.xlu0 %1081
    %v1083 = vrcp.pop %v1079
    %v1084 = vrcp.pop %v1082
    %v1085 = vmul.f32 %v1074, %v1083
    %v1086 = vmul.f32 %v1076, %v1084
    %v1088 = vsel %vm462, %v1085, 0
    %v1091 = vsel %vm462, %v1086, 0
    %v1094 = vsel %vm462, %v340, 0
    %1096 = vmatprep.subr.mxu0 0.0
    %1097 = vmatpush1.xpose.msra.mxu0 0.0
    %1098 = vmatprep.subr.mxu0 0.0
    %1099 = vmatpush1.xpose.msra.mxu0 0.0
    %1100 = vmatprep.subr.mxu0 0.0
    %1101 = vmatpush1.xpose.msra.mxu0 0.0
    %1102 = vmatprep.subr.mxu0 0.0
    %1103 = vmatpush1.xpose.msra.mxu0 0.0
    %1104 = vmatprep.subr.mxu0 0.0
    %1105 = vmatpush1.xpose.msra.mxu0 0.0
    %1106 = vmatprep.subr.mxu0 0.0
    %1107 = vmatpush1.xpose.msra.mxu0 0.0
    %1108 = vmatprep.subr.mxu0 0.0
    %1109 = vmatpush1.xpose.msra.mxu0 0.0
    %1110 = vmatprep.subr.mxu0 0.0
    %1111 = vmatpush1.xpose.msra.mxu0 0.0
    %1112 = vmatprep.subr.mxu0 0.0
    %1113 = vmatpush1.xpose.msra.mxu0 0.0
    %1114 = vmatprep.subr.mxu0 0.0
    %1115 = vmatpush1.xpose.msra.mxu0 0.0
    %1116 = vmatprep.subr.mxu0 0.0
    %1117 = vmatpush1.xpose.msra.mxu0 0.0
    %1118 = vmatprep.subr.mxu0 0.0
    %1119 = vmatpush1.xpose.msra.mxu0 0.0
    %1120 = vmatprep.subr.mxu0 0.0
    %1121 = vmatpush1.xpose.msra.mxu0 0.0
    %1122 = vmatprep.subr.mxu0 0.0
    %1123 = vmatpush1.xpose.msra.mxu0 0.0
    %1124 = vmatprep.subr.mxu0 0.0
    %1125 = vmatpush1.xpose.msra.mxu0 0.0
    %1126 = vmatprep.subr.mxu0 0.0
    %1127 = vmatpush1.xpose.msra.mxu0 %v1094
    %1128 = vmatprep.subr.mxu0 0.0
    %1129 = vmatpush2.xpose.msra.mxu0 0.0
    %1130 = vmatprep.subr.mxu0 0.0
    %1131 = vmatpush2.xpose.msra.mxu0 0.0
    %1132 = vmatprep.subr.mxu0 0.0
    %1133 = vmatpush2.xpose.msra.mxu0 0.0
    %1134 = vmatprep.subr.mxu0 0.0
    %1135 = vmatpush2.xpose.msra.mxu0 0.0
    %1136 = vmatprep.subr.mxu0 0.0
    %1137 = vmatpush2.xpose.msra.mxu0 0.0
    %1138 = vmatprep.subr.mxu0 0.0
    %1139 = vmatpush2.xpose.msra.mxu0 0.0
    %1140 = vmatprep.subr.mxu0 0.0
    %1141 = vmatpush2.xpose.msra.mxu0 0.0
    %1142 = vmatprep.subr.mxu0 0.0
    %1143 = vmatpush2.xpose.msra.mxu0 0.0
    %1144 = vmatprep.subr.mxu0 0.0
    %1145 = vmatpush2.xpose.msra.mxu0 0.0
    %1146 = vmatprep.subr.mxu0 0.0
    %1147 = vmatpush2.xpose.msra.mxu0 0.0
    %1148 = vmatprep.subr.mxu0 0.0
    %1149 = vmatpush2.xpose.msra.mxu0 0.0
    %1150 = vmatprep.subr.mxu0 0.0
    %1151 = vmatpush2.xpose.msra.mxu0 0.0
    %1152 = vmatprep.subr.mxu0 0.0
    %1153 = vmatpush2.xpose.msra.mxu0 0.0
    %1154 = vmatprep.subr.mxu0 0.0
    %1155 = vmatpush2.xpose.msra.mxu0 0.0
    %1156 = vmatprep.subr.mxu0 0.0
    %1157 = vmatpush2.xpose.msra.mxu0 0.0
    %1158 = vmatprep.subr.mxu0 0.0
    %1159 = vmatpush2.xpose.msra.mxu0 0.0
    %1160 = vmatprep.mubr.f32.mxu0 0.0
    %1161 = vmatmul.mubr.f32.gmra.mxu0 %v1088
    %v1162 = vpop.f32.mrf.mxu0
    %v1163 = vadd.f32 0.0, %v1162
    %v1164 = vpop.f32.mrf.mxu0
    %1165 = vmatprep.mubr.f32.mxu0 0.0
    %1166 = vmatmul.mubr.f32.gmra.mxu0 %v1091
    %v1167 = vpop.f32.mrf.mxu0
    %v1168 = vadd.f32 0.0, %v1167
    %v1169 = vpop.f32.mrf.mxu0
    %1170 = vdwg.mxu0
    %v1171 = vld [vmem:[%s4 + $0x10] sm:$0xff]
    %v1173 = vsel %vm380, %v1163, 0
    %v1176 = vsel %vm380, %v1168, 0
    %1178 = vmatprep.subr.mxu0 0.0
    %1179 = vmatpush1.msra.mxu0 0.0
    %1180 = vmatprep.subr.mxu0 0.0
    %1181 = vmatpush1.msra.mxu0 0.0
    %1182 = vmatprep.subr.mxu0 0.0
    %1183 = vmatpush1.msra.mxu0 0.0
    %1184 = vmatprep.subr.mxu0 0.0
    %1185 = vmatpush1.msra.mxu0 0.0
    %1186 = vmatprep.subr.mxu0 0.0
    %1187 = vmatpush1.msra.mxu0 0.0
    %1188 = vmatprep.subr.mxu0 0.0
    %1189 = vmatpush1.msra.mxu0 0.0
    %1190 = vmatprep.subr.mxu0 0.0
    %1191 = vmatpush1.msra.mxu0 0.0
    %1192 = vmatprep.subr.mxu0 0.0
    %1193 = vmatpush1.msra.mxu0 0.0
    %1194 = vmatprep.subr.mxu0 0.0
    %1195 = vmatpush1.msra.mxu0 0.0
    %1196 = vmatprep.subr.mxu0 0.0
    %1197 = vmatpush1.msra.mxu0 0.0
    %1198 = vmatprep.subr.mxu0 0.0
    %1199 = vmatpush1.msra.mxu0 0.0
    %1200 = vmatprep.subr.mxu0 0.0
    %1201 = vmatpush1.msra.mxu0 0.0
    %1202 = vmatprep.subr.mxu0 0.0
    %1203 = vmatpush1.msra.mxu0 0.0
    %1204 = vmatprep.subr.mxu0 0.0
    %1205 = vmatpush1.msra.mxu0 0.0
    %1206 = vmatprep.subr.mxu0 0.0
    %1207 = vmatpush1.msra.mxu0 0.0
    %1208 = vmatprep.subr.mxu0 0.0
    %1209 = vmatpush1.msra.mxu0 %v1171
    %1210 = vmatprep.subr.mxu0 0.0
    %1211 = vmatpush2.msra.mxu0 0.0
    %1212 = vmatprep.subr.mxu0 0.0
    %1213 = vmatpush2.msra.mxu0 0.0
    %1214 = vmatprep.subr.mxu0 0.0
    %1215 = vmatpush2.msra.mxu0 0.0
    %1216 = vmatprep.subr.mxu0 0.0
    %1217 = vmatpush2.msra.mxu0 0.0
    %1218 = vmatprep.subr.mxu0 0.0
    %1219 = vmatpush2.msra.mxu0 0.0
    %1220 = vmatprep.subr.mxu0 0.0
    %1221 = vmatpush2.msra.mxu0 0.0
    %1222 = vmatprep.subr.mxu0 0.0
    %1223 = vmatpush2.msra.mxu0 0.0
    %1224 = vmatprep.subr.mxu0 0.0
    %1225 = vmatpush2.msra.mxu0 0.0
    %1226 = vmatprep.subr.mxu0 0.0
    %1227 = vmatpush2.msra.mxu0 0.0
    %1228 = vmatprep.subr.mxu0 0.0
    %1229 = vmatpush2.msra.mxu0 0.0
    %1230 = vmatprep.subr.mxu0 0.0
    %1231 = vmatpush2.msra.mxu0 0.0
    %1232 = vmatprep.subr.mxu0 0.0
    %1233 = vmatpush2.msra.mxu0 0.0
    %1234 = vmatprep.subr.mxu0 0.0
    %1235 = vmatpush2.msra.mxu0 0.0
    %1236 = vmatprep.subr.mxu0 0.0
    %1237 = vmatpush2.msra.mxu0 0.0
    %1238 = vmatprep.subr.mxu0 0.0
    %1239 = vmatpush2.msra.mxu0 0.0
    %1240 = vmatprep.subr.mxu0 0.0
    %1241 = vmatpush2.msra.mxu0 0.0
    %1242 = vmatprep.mubr.f32.mxu0 0.0
    %1243 = vmatmul.mubr.f32.gmra.mxu0 %v1173
    %v1244 = vpop.f32.mrf.mxu0
    %v1245 = vadd.f32 0.0, %v1244
    %v1246 = vpop.f32.mrf.mxu0
    %1247 = vmatprep.mubr.f32.mxu0 0.0
    %1248 = vmatmul.mubr.f32.gmra.mxu0 %v1176
    %v1249 = vpop.f32.mrf.mxu0
    %v1250 = vadd.f32 0.0, %v1249
    %v1251 = vpop.f32.mrf.mxu0
    %1252 = vdwg.mxu0
    %v1253 = vadd.f32 %v944, %v1245
    %v1254 = vadd.f32 %v949, %v1250
    %1255 = vxpose.xlu0.b32.start [1/16] %v305, 128
    %1256 = vxpose.xlu0.b32.cont [2/16] 0.0, 128
    %1257 = vxpose.xlu0.b32.cont [3/16] 0.0, 128
    %1258 = vxpose.xlu0.b32.cont [4/16] 0.0, 128
    %1259 = vxpose.xlu0.b32.cont [5/16] 0.0, 128
    %1260 = vxpose.xlu0.b32.cont [6/16] 0.0, 128
    %1261 = vxpose.xlu0.b32.cont [7/16] 0.0, 128
    %1262 = vxpose.xlu0.b32.cont [8/16] 0.0, 128
    %1263 = vxpose.xlu0.b32.cont [9/16] 0.0, 128
    %1264 = vxpose.xlu0.b32.cont [10/16] 0.0, 128
    %1265 = vxpose.xlu0.b32.cont [11/16] 0.0, 128
    %1266 = vxpose.xlu0.b32.cont [12/16] 0.0, 128
    %1267 = vxpose.xlu0.b32.cont [13/16] 0.0, 128
    %1268 = vxpose.xlu0.b32.cont [14/16] 0.0, 128
    %1269 = vxpose.xlu0.b32.cont [15/16] 0.0, 128
    %1270 = vxpose.xlu0.b32.end [16/16] 0.0, 128
    %v1271 = vpop.trf.xlu0
    %v1272 = vpop.trf.xlu0
    %v1273 = vpop.trf.xlu0
    %v1274 = vpop.trf.xlu0
    %v1275 = vpop.trf.xlu0
    %v1276 = vpop.trf.xlu0
    %v1277 = vpop.trf.xlu0
    %v1278 = vpop.trf.xlu0
    %v1279 = vpop.trf.xlu0
    %v1280 = vpop.trf.xlu0
    %v1281 = vpop.trf.xlu0
    %v1282 = vpop.trf.xlu0
    %v1283 = vpop.trf.xlu0
    %v1284 = vpop.trf.xlu0
    %v1285 = vpop.trf.xlu0
    %v1286 = vpop.trf.xlu0
    %v1288 = vsel %vm380, %v1271, 0
    %v1291 = vsel %vm380, %v1272, 0
    %1293 = vmatprep.subr.mxu0 0.0
    %1294 = vmatpush1.msra.mxu0 0.0
    %1295 = vmatprep.subr.mxu0 0.0
    %1296 = vmatpush1.msra.mxu0 0.0
    %1297 = vmatprep.subr.mxu0 0.0
    %1298 = vmatpush1.msra.mxu0 0.0
    %1299 = vmatprep.subr.mxu0 0.0
    %1300 = vmatpush1.msra.mxu0 0.0
    %1301 = vmatprep.subr.mxu0 0.0
    %1302 = vmatpush1.msra.mxu0 0.0
    %1303 = vmatprep.subr.mxu0 0.0
    %1304 = vmatpush1.msra.mxu0 0.0
    %1305 = vmatprep.subr.mxu0 0.0
    %1306 = vmatpush1.msra.mxu0 0.0
    %1307 = vmatprep.subr.mxu0 0.0
    %1308 = vmatpush1.msra.mxu0 0.0
    %1309 = vmatprep.subr.mxu0 0.0
    %1310 = vmatpush1.msra.mxu0 0.0
    %1311 = vmatprep.subr.mxu0 0.0
    %1312 = vmatpush1.msra.mxu0 0.0
    %1313 = vmatprep.subr.mxu0 0.0
    %1314 = vmatpush1.msra.mxu0 0.0
    %1315 = vmatprep.subr.mxu0 0.0
    %1316 = vmatpush1.msra.mxu0 0.0
    %1317 = vmatprep.subr.mxu0 0.0
    %1318 = vmatpush1.msra.mxu0 0.0
    %1319 = vmatprep.subr.mxu0 0.0
    %1320 = vmatpush1.msra.mxu0 0.0
    %1321 = vmatprep.subr.mxu0 0.0
    %1322 = vmatpush1.msra.mxu0 0.0
    %1323 = vmatprep.subr.mxu0 0.0
    %1324 = vmatpush1.msra.mxu0 %v325
    %1325 = vmatprep.subr.mxu0 0.0
    %1326 = vmatpush2.msra.mxu0 0.0
    %1327 = vmatprep.subr.mxu0 0.0
    %1328 = vmatpush2.msra.mxu0 0.0
    %1329 = vmatprep.subr.mxu0 0.0
    %1330 = vmatpush2.msra.mxu0 0.0
    %1331 = vmatprep.subr.mxu0 0.0
    %1332 = vmatpush2.msra.mxu0 0.0
    %1333 = vmatprep.subr.mxu0 0.0
    %1334 = vmatpush2.msra.mxu0 0.0
    %1335 = vmatprep.subr.mxu0 0.0
    %1336 = vmatpush2.msra.mxu0 0.0
    %1337 = vmatprep.subr.mxu0 0.0
    %1338 = vmatpush2.msra.mxu0 0.0
    %1339 = vmatprep.subr.mxu0 0.0
    %1340 = vmatpush2.msra.mxu0 0.0
    %1341 = vmatprep.subr.mxu0 0.0
    %1342 = vmatpush2.msra.mxu0 0.0
    %1343 = vmatprep.subr.mxu0 0.0
    %1344 = vmatpush2.msra.mxu0 0.0
    %1345 = vmatprep.subr.mxu0 0.0
    %1346 = vmatpush2.msra.mxu0 0.0
    %1347 = vmatprep.subr.mxu0 0.0
    %1348 = vmatpush2.msra.mxu0 0.0
    %1349 = vmatprep.subr.mxu0 0.0
    %1350 = vmatpush2.msra.mxu0 0.0
    %1351 = vmatprep.subr.mxu0 0.0
    %1352 = vmatpush2.msra.mxu0 0.0
    %1353 = vmatprep.subr.mxu0 0.0
    %1354 = vmatpush2.msra.mxu0 0.0
    %1355 = vmatprep.subr.mxu0 0.0
    %1356 = vmatpush2.msra.mxu0 0.0
    %1357 = vmatprep.mubr.f32.mxu0 0.0
    %1358 = vmatmul.mubr.f32.gmra.mxu0 %v1288
    %v1359 = vpop.f32.mrf.mxu0
    %v1360 = vadd.f32 %v35, %v1359
    %v1361 = vpop.f32.mrf.mxu0
    %1362 = vmatprep.mubr.f32.mxu0 0.0
    %1363 = vmatmul.mubr.f32.gmra.mxu0 %v1291
    %v1364 = vpop.f32.mrf.mxu0
    %v1365 = vadd.f32 %v36, %v1364
    %v1366 = vpop.f32.mrf.mxu0
    %1367 = vdwg.mxu0
    %v1368 = vsel %vm462, %v1360, -inf
    %1369 = vmax.xlane.f32.xlu0 %v1368
    %v1370 = vpop.xlane.xlu0 %1369
    %v1371 = vsel %vm462, %v1365, -inf
    %1372 = vmax.xlane.f32.xlu0 %v1371
    %v1373 = vpop.xlane.xlu0 %1372
    %v1374 = vsub.f32 %v1360, %v1370
    %v1375 = vsub.f32 %v1365, %v1373
    %v1376 = vmul.f32 %v1374, 1.442695
    %v1377 = vpow.pop %v1376
    %v1378 = vmul.f32 %v1375, 1.442695
    %v1379 = vpow.pop %v1378
    %v1380 = vsel %vm462, %v1377, 0.0
    %1381 = vadd.xlane.f32.xlu0 %v1380
    %v1382 = vpop.xlane.xlu0 %1381
    %v1383 = vsel %vm462, %v1379, 0.0
    %1384 = vadd.xlane.f32.xlu0 %v1383
    %v1385 = vpop.xlane.xlu0 %1384
    %v1386 = vrcp.pop %v1382
    %v1387 = vrcp.pop %v1385
    %v1388 = vmul.f32 %v1377, %v1386
    %v1389 = vmul.f32 %v1379, %v1387
    %v1391 = vsel %vm462, %v1388, 0
    %v1394 = vsel %vm462, %v1389, 0
    %v1397 = vsel %vm462, %v345, 0
    %1399 = vmatprep.subr.mxu0 0.0
    %1400 = vmatpush1.xpose.msra.mxu0 0.0
    %1401 = vmatprep.subr.mxu0 0.0
    %1402 = vmatpush1.xpose.msra.mxu0 0.0
    %1403 = vmatprep.subr.mxu0 0.0
    %1404 = vmatpush1.xpose.msra.mxu0 0.0
    %1405 = vmatprep.subr.mxu0 0.0
    %1406 = vmatpush1.xpose.msra.mxu0 0.0
    %1407 = vmatprep.subr.mxu0 0.0
    %1408 = vmatpush1.xpose.msra.mxu0 0.0
    %1409 = vmatprep.subr.mxu0 0.0
    %1410 = vmatpush1.xpose.msra.mxu0 0.0
    %1411 = vmatprep.subr.mxu0 0.0
    %1412 = vmatpush1.xpose.msra.mxu0 0.0
    %1413 = vmatprep.subr.mxu0 0.0
    %1414 = vmatpush1.xpose.msra.mxu0 0.0
    %1415 = vmatprep.subr.mxu0 0.0
    %1416 = vmatpush1.xpose.msra.mxu0 0.0
    %1417 = vmatprep.subr.mxu0 0.0
    %1418 = vmatpush1.xpose.msra.mxu0 0.0
    %1419 = vmatprep.subr.mxu0 0.0
    %1420 = vmatpush1.xpose.msra.mxu0 0.0
    %1421 = vmatprep.subr.mxu0 0.0
    %1422 = vmatpush1.xpose.msra.mxu0 0.0
    %1423 = vmatprep.subr.mxu0 0.0
    %1424 = vmatpush1.xpose.msra.mxu0 0.0
    %1425 = vmatprep.subr.mxu0 0.0
    %1426 = vmatpush1.xpose.msra.mxu0 0.0
    %1427 = vmatprep.subr.mxu0 0.0
    %1428 = vmatpush1.xpose.msra.mxu0 0.0
    %1429 = vmatprep.subr.mxu0 0.0
    %1430 = vmatpush1.xpose.msra.mxu0 %v1397
    %1431 = vmatprep.subr.mxu0 0.0
    %1432 = vmatpush2.xpose.msra.mxu0 0.0
    %1433 = vmatprep.subr.mxu0 0.0
    %1434 = vmatpush2.xpose.msra.mxu0 0.0
    %1435 = vmatprep.subr.mxu0 0.0
    %1436 = vmatpush2.xpose.msra.mxu0 0.0
    %1437 = vmatprep.subr.mxu0 0.0
    %1438 = vmatpush2.xpose.msra.mxu0 0.0
    %1439 = vmatprep.subr.mxu0 0.0
    %1440 = vmatpush2.xpose.msra.mxu0 0.0
    %1441 = vmatprep.subr.mxu0 0.0
    %1442 = vmatpush2.xpose.msra.mxu0 0.0
    %1443 = vmatprep.subr.mxu0 0.0
    %1444 = vmatpush2.xpose.msra.mxu0 0.0
    %1445 = vmatprep.subr.mxu0 0.0
    %1446 = vmatpush2.xpose.msra.mxu0 0.0
    %1447 = vmatprep.subr.mxu0 0.0
    %1448 = vmatpush2.xpose.msra.mxu0 0.0
    %1449 = vmatprep.subr.mxu0 0.0
    %1450 = vmatpush2.xpose.msra.mxu0 0.0
    %1451 = vmatprep.subr.mxu0 0.0
    %1452 = vmatpush2.xpose.msra.mxu0 0.0
    %1453 = vmatprep.subr.mxu0 0.0
    %1454 = vmatpush2.xpose.msra.mxu0 0.0
    %1455 = vmatprep.subr.mxu0 0.0
    %1456 = vmatpush2.xpose.msra.mxu0 0.0
    %1457 = vmatprep.subr.mxu0 0.0
    %1458 = vmatpush2.xpose.msra.mxu0 0.0
    %1459 = vmatprep.subr.mxu0 0.0
    %1460 = vmatpush2.xpose.msra.mxu0 0.0
    %1461 = vmatprep.subr.mxu0 0.0
    %1462 = vmatpush2.xpose.msra.mxu0 0.0
    %1463 = vmatprep.mubr.f32.mxu0 0.0
    %1464 = vmatmul.mubr.f32.gmra.mxu0 %v1391
    %v1465 = vpop.f32.mrf.mxu0
    %v1466 = vadd.f32 0.0, %v1465
    %v1467 = vpop.f32.mrf.mxu0
    %1468 = vmatprep.mubr.f32.mxu0 0.0
    %1469 = vmatmul.mubr.f32.gmra.mxu0 %v1394
    %v1470 = vpop.f32.mrf.mxu0
    %v1471 = vadd.f32 0.0, %v1470
    %v1472 = vpop.f32.mrf.mxu0
    %1473 = vdwg.mxu0
    %v1474 = vld [vmem:[%s4 + $0x18] sm:$0xff]
    %v1476 = vsel %vm380, %v1466, 0
    %v1479 = vsel %vm380, %v1471, 0
    %1481 = vmatprep.subr.mxu0 0.0
    %1482 = vmatpush1.msra.mxu0 0.0
    %1483 = vmatprep.subr.mxu0 0.0
    %1484 = vmatpush1.msra.mxu0 0.0
    %1485 = vmatprep.subr.mxu0 0.0
    %1486 = vmatpush1.msra.mxu0 0.0
    %1487 = vmatprep.subr.mxu0 0.0
    %1488 = vmatpush1.msra.mxu0 0.0
    %1489 = vmatprep.subr.mxu0 0.0
    %1490 = vmatpush1.msra.mxu0 0.0
    %1491 = vmatprep.subr.mxu0 0.0
    %1492 = vmatpush1.msra.mxu0 0.0
    %1493 = vmatprep.subr.mxu0 0.0
    %1494 = vmatpush1.msra.mxu0 0.0
    %1495 = vmatprep.subr.mxu0 0.0
    %1496 = vmatpush1.msra.mxu0 0.0
    %1497 = vmatprep.subr.mxu0 0.0
    %1498 = vmatpush1.msra.mxu0 0.0
    %1499 = vmatprep.subr.mxu0 0.0
    %1500 = vmatpush1.msra.mxu0 0.0
    %1501 = vmatprep.subr.mxu0 0.0
    %1502 = vmatpush1.msra.mxu0 0.0
    %1503 = vmatprep.subr.mxu0 0.0
    %1504 = vmatpush1.msra.mxu0 0.0
    %1505 = vmatprep.subr.mxu0 0.0
    %1506 = vmatpush1.msra.mxu0 0.0
    %1507 = vmatprep.subr.mxu0 0.0
    %1508 = vmatpush1.msra.mxu0 0.0
    %1509 = vmatprep.subr.mxu0 0.0
    %1510 = vmatpush1.msra.mxu0 0.0
    %1511 = vmatprep.subr.mxu0 0.0
    %1512 = vmatpush1.msra.mxu0 %v1474
    %1513 = vmatprep.subr.mxu0 0.0
    %1514 = vmatpush2.msra.mxu0 0.0
    %1515 = vmatprep.subr.mxu0 0.0
    %1516 = vmatpush2.msra.mxu0 0.0
    %1517 = vmatprep.subr.mxu0 0.0
    %1518 = vmatpush2.msra.mxu0 0.0
    %1519 = vmatprep.subr.mxu0 0.0
    %1520 = vmatpush2.msra.mxu0 0.0
    %1521 = vmatprep.subr.mxu0 0.0
    %1522 = vmatpush2.msra.mxu0 0.0
    %1523 = vmatprep.subr.mxu0 0.0
    %1524 = vmatpush2.msra.mxu0 0.0
    %1525 = vmatprep.subr.mxu0 0.0
    %1526 = vmatpush2.msra.mxu0 0.0
    %1527 = vmatprep.subr.mxu0 0.0
    %1528 = vmatpush2.msra.mxu0 0.0
    %1529 = vmatprep.subr.mxu0 0.0
    %1530 = vmatpush2.msra.mxu0 0.0
    %1531 = vmatprep.subr.mxu0 0.0
    %1532 = vmatpush2.msra.mxu0 0.0
    %1533 = vmatprep.subr.mxu0 0.0
    %1534 = vmatpush2.msra.mxu0 0.0
    %1535 = vmatprep.subr.mxu0 0.0
    %1536 = vmatpush2.msra.mxu0 0.0
    %1537 = vmatprep.subr.mxu0 0.0
    %1538 = vmatpush2.msra.mxu0 0.0
    %1539 = vmatprep.subr.mxu0 0.0
    %1540 = vmatpush2.msra.mxu0 0.0
    %1541 = vmatprep.subr.mxu0 0.0
    %1542 = vmatpush2.msra.mxu0 0.0
    %1543 = vmatprep.subr.mxu0 0.0
    %1544 = vmatpush2.msra.mxu0 0.0
    %1545 = vmatprep.mubr.f32.mxu0 0.0
    %1546 = vmatmul.mubr.f32.gmra.mxu0 %v1476
    %v1547 = vpop.f32.mrf.mxu0
    %v1548 = vadd.f32 0.0, %v1547
    %v1549 = vpop.f32.mrf.mxu0
    %1550 = vmatprep.mubr.f32.mxu0 0.0
    %1551 = vmatmul.mubr.f32.gmra.mxu0 %v1479
    %v1552 = vpop.f32.mrf.mxu0
    %v1553 = vadd.f32 0.0, %v1552
    %v1554 = vpop.f32.mrf.mxu0
    %1555 = vdwg.mxu0
    %v1556 = vadd.f32 %v1253, %v1548
    %v1557 = vadd.f32 %v1254, %v1553
    %v1558 = vlaneseq
    %v1559 = vshrl.u32 %v1558, 7
    %v1560 = vsub.s32 0, %v1559
    %v1561 = vrot.slane %v41, %v1560
    %v1562 = vadd.f32 %v1556, %v1561
    %v1563 = vadd.f32 %v1557, %v1561
    %v1564 = vadd.f32 %v33, %v1562
    %v1565 = vadd.f32 %v34, %v1563
    %v1566 = vsel %vm43, %v1564, 0.0
    %1567 = vadd.xlane.f32.xlu0 %v1566
    %v1568 = vpop.xlane.xlu0 %1567
    %v1569 = vsel %vm43, %v1565, 0.0
    %1570 = vadd.xlane.f32.xlu0 %v1569
    %v1571 = vpop.xlane.xlu0 %1570
    %v1572 = vmul.f32 %v1568, %v50
    %v1573 = vmul.f32 %v1571, %v50
    %v1574 = vsub.f32 %v1564, %v1572
    %v1575 = vsub.f32 %v1565, %v1573
    %v1576 = vmul.f32 %v1574, %v1574
    %v1577 = vmul.f32 %v1575, %v1575
    %v1578 = vsel %vm43, %v1576, 0.0
    %1579 = vadd.xlane.f32.xlu0 %v1578
    %v1580 = vpop.xlane.xlu0 %1579
    %v1581 = vsel %vm43, %v1577, 0.0
    %1582 = vadd.xlane.f32.xlu0 %v1581
    %v1583 = vpop.xlane.xlu0 %1582
    %v1584 = vmul.f32 %v1580, 0.032258064
    %v1585 = vmul.f32 %v1583, 0.032258064
    %v1586 = vrsqrt.pop %v1584
    %v1587 = vmul.f32 %v1584, %v1586
    %vm1588 = vcmp.eq.f32.partialorder %v1584, inf
    %v1589 = vsel %vm1588, %v1584, %v1587
    %vm1590 = vcmp.eq.f32.partialorder %v1584, 0.0
    %v1591 = vand.u32 %v1584, 2147483648
    %v1592 = vsel %vm1590, %v1591, %v1589
    %v1593 = vrsqrt.pop %v1585
    %v1594 = vmul.f32 %v1585, %v1593
    %vm1595 = vcmp.eq.f32.partialorder %v1585, inf
    %v1596 = vsel %vm1595, %v1585, %v1594
    %vm1597 = vcmp.eq.f32.partialorder %v1585, 0.0
    %v1598 = vand.u32 %v1585, 2147483648
    %v1599 = vsel %vm1597, %v1598, %v1596
    %v1600 = vadd.f32 %v1592, 1e-06
    %v1601 = vadd.f32 %v1599, 1e-06
    %v1602 = vrcp.pop %v1600
    %v1603 = vrcp.pop %v1601
    %v1604 = vmul.f32 %v1574, %v1602
    %v1605 = vmul.f32 %v1575, %v1603
    %v1606 = vlaneseq
    %v1607 = vshrl.u32 %v1606, 7
    %v1608 = vsub.s32 0, %v1607
    %v1609 = vrot.slane %v39, %v1608
    %v1610 = vmul.f32 %v1609, %v1604
    %v1611 = vmul.f32 %v1609, %v1605
    %v1612 = vlaneseq
    %v1613 = vshrl.u32 %v1612, 7
    %v1614 = vsub.s32 0, %v1613
    %v1615 = vrot.slane %v40, %v1614
    %v1616 = vadd.f32 %v1610, %v1615
    %v1617 = vadd.f32 %v1611, %v1615
    %v1618 = vld [vmem:[%s5] sm:$0xff]
    %v1619 = vld [vmem:[%s5 + $0x8] sm:$0xff]
    %v1620 = vld [vmem:[%s5 + $0x10] sm:$0xff]
    %v1621 = vld [vmem:[%s5 + $0x18] sm:$0xff]
    %v1622 = vld [vmem:[%s8] sm:$0x1]
    %v1624 = vlaneseq
    %v1625 = vshrl.u32 %v1624, 7
    %v1626 = vsub.s32 0, %v1625
    %v1627 = vrot.slane %v1622, %v1626
    %v1630 = vsel %vm43, %v1616, 0
    %v1633 = vsel %vm43, %v1617, 0
    %1635 = vmatprep.subr.mxu0 0.0
    %1636 = vmatpush1.msra.mxu0 0.0
    %1637 = vmatprep.subr.mxu0 0.0
    %1638 = vmatpush1.msra.mxu0 0.0
    %1639 = vmatprep.subr.mxu0 0.0
    %1640 = vmatpush1.msra.mxu0 0.0
    %1641 = vmatprep.subr.mxu0 0.0
    %1642 = vmatpush1.msra.mxu0 0.0
    %1643 = vmatprep.subr.mxu0 0.0
    %1644 = vmatpush1.msra.mxu0 0.0
    %1645 = vmatprep.subr.mxu0 0.0
    %1646 = vmatpush1.msra.mxu0 0.0
    %1647 = vmatprep.subr.mxu0 0.0
    %1648 = vmatpush1.msra.mxu0 0.0
    %1649 = vmatprep.subr.mxu0 0.0
    %1650 = vmatpush1.msra.mxu0 0.0
    %1651 = vmatprep.subr.mxu0 0.0
    %1652 = vmatpush1.msra.mxu0 0.0
    %1653 = vmatprep.subr.mxu0 0.0
    %1654 = vmatpush1.msra.mxu0 0.0
    %1655 = vmatprep.subr.mxu0 0.0
    %1656 = vmatpush1.msra.mxu0 0.0
    %1657 = vmatprep.subr.mxu0 0.0
    %1658 = vmatpush1.msra.mxu0 0.0
    %1659 = vmatprep.subr.mxu0 0.0
    %1660 = vmatpush1.msra.mxu0 %v1621
    %1661 = vmatprep.subr.mxu0 0.0
    %1662 = vmatpush1.msra.mxu0 %v1620
    %1663 = vmatprep.subr.mxu0 0.0
    %1664 = vmatpush1.msra.mxu0 %v1619
    %1665 = vmatprep.subr.mxu0 0.0
    %1666 = vmatpush1.msra.mxu0 %v1618
    %1667 = vmatprep.subr.mxu0 0.0
    %1668 = vmatpush2.msra.mxu0 0.0
    %1669 = vmatprep.subr.mxu0 0.0
    %1670 = vmatpush2.msra.mxu0 0.0
    %1671 = vmatprep.subr.mxu0 0.0
    %1672 = vmatpush2.msra.mxu0 0.0
    %1673 = vmatprep.subr.mxu0 0.0
    %1674 = vmatpush2.msra.mxu0 0.0
    %1675 = vmatprep.subr.mxu0 0.0
    %1676 = vmatpush2.msra.mxu0 0.0
    %1677 = vmatprep.subr.mxu0 0.0
    %1678 = vmatpush2.msra.mxu0 0.0
    %1679 = vmatprep.subr.mxu0 0.0
    %1680 = vmatpush2.msra.mxu0 0.0
    %1681 = vmatprep.subr.mxu0 0.0
    %1682 = vmatpush2.msra.mxu0 0.0
    %1683 = vmatprep.subr.mxu0 0.0
    %1684 = vmatpush2.msra.mxu0 0.0
    %1685 = vmatprep.subr.mxu0 0.0
    %1686 = vmatpush2.msra.mxu0 0.0
    %1687 = vmatprep.subr.mxu0 0.0
    %1688 = vmatpush2.msra.mxu0 0.0
    %1689 = vmatprep.subr.mxu0 0.0
    %1690 = vmatpush2.msra.mxu0 0.0
    %1691 = vmatprep.subr.mxu0 0.0
    %1692 = vmatpush2.msra.mxu0 0.0
    %1693 = vmatprep.subr.mxu0 0.0
    %1694 = vmatpush2.msra.mxu0 0.0
    %1695 = vmatprep.subr.mxu0 0.0
    %1696 = vmatpush2.msra.mxu0 0.0
    %1697 = vmatprep.subr.mxu0 0.0
    %1698 = vmatpush2.msra.mxu0 0.0
    %1699 = vmatprep.mubr.f32.mxu0 0.0
    %1700 = vmatmul.mubr.f32.gmra.mxu0 %v1630
    %v1701 = vpop.f32.mrf.mxu0
    %v1702 = vadd.f32 %v1627, %v1701
    %v1703 = vpop.f32.mrf.mxu0
    %1704 = vmatprep.mubr.f32.mxu0 0.0
    %1705 = vmatmul.mubr.f32.gmra.mxu0 %v1633
    %v1706 = vpop.f32.mrf.mxu0
    %v1707 = vadd.f32 %v1627, %v1706
    %v1708 = vpop.f32.mrf.mxu0
    %1709 = vdwg.mxu0
    %v1710 = vmax.f32 %v1702, 0.0
    %v1711 = vmax.f32 %v1707, 0.0
    %v1712 = vld [vmem:[%s6] sm:$0xff]
    %v1713 = vld [vmem:[%s6 + $0x8] sm:$0xff]
    %v1714 = vld [vmem:[%s6 + $0x10] sm:$0xff]
    %v1715 = vld [vmem:[%s6 + $0x18] sm:$0xff]
    %v1716 = vld [vmem:[%s6 + $0x20] sm:$0xff]
    %v1717 = vld [vmem:[%s6 + $0x28] sm:$0xff]
    %v1718 = vld [vmem:[%s6 + $0x30] sm:$0xff]
    %v1719 = vld [vmem:[%s6 + $0x38] sm:$0xff]
    %v1720 = vlaneseq
    %v1721 = vshrl.u32 %v1720, 7
    %v1722 = vsub.s32 0, %v1721
    %v1723 = vrot.slane %v42, %v1722
    %vm1724 = vcmask 523264
    %v1726 = vsel %vm1724, %v1710, 0
    %v1729 = vsel %vm1724, %v1711, 0
    %1731 = vmatprep.subr.mxu0 0.0
    %1732 = vmatpush1.msra.mxu0 0.0
    %1733 = vmatprep.subr.mxu0 0.0
    %1734 = vmatpush1.msra.mxu0 0.0
    %1735 = vmatprep.subr.mxu0 0.0
    %1736 = vmatpush1.msra.mxu0 0.0
    %1737 = vmatprep.subr.mxu0 0.0
    %1738 = vmatpush1.msra.mxu0 0.0
    %1739 = vmatprep.subr.mxu0 0.0
    %1740 = vmatpush1.msra.mxu0 0.0
    %1741 = vmatprep.subr.mxu0 0.0
    %1742 = vmatpush1.msra.mxu0 0.0
    %1743 = vmatprep.subr.mxu0 0.0
    %1744 = vmatpush1.msra.mxu0 0.0
    %1745 = vmatprep.subr.mxu0 0.0
    %1746 = vmatpush1.msra.mxu0 0.0
    %1747 = vmatprep.subr.mxu0 0.0
    %1748 = vmatpush1.msra.mxu0 %v1719
    %1749 = vmatprep.subr.mxu0 0.0
    %1750 = vmatpush1.msra.mxu0 %v1718
    %1751 = vmatprep.subr.mxu0 0.0
    %1752 = vmatpush1.msra.mxu0 %v1717
    %1753 = vmatprep.subr.mxu0 0.0
    %1754 = vmatpush1.msra.mxu0 %v1716
    %1755 = vmatprep.subr.mxu0 0.0
    %1756 = vmatpush1.msra.mxu0 %v1715
    %1757 = vmatprep.subr.mxu0 0.0
    %1758 = vmatpush1.msra.mxu0 %v1714
    %1759 = vmatprep.subr.mxu0 0.0
    %1760 = vmatpush1.msra.mxu0 %v1713
    %1761 = vmatprep.subr.mxu0 0.0
    %1762 = vmatpush1.msra.mxu0 %v1712
    %1763 = vmatprep.subr.mxu0 0.0
    %1764 = vmatpush2.msra.mxu0 0.0
    %1765 = vmatprep.subr.mxu0 0.0
    %1766 = vmatpush2.msra.mxu0 0.0
    %1767 = vmatprep.subr.mxu0 0.0
    %1768 = vmatpush2.msra.mxu0 0.0
    %1769 = vmatprep.subr.mxu0 0.0
    %1770 = vmatpush2.msra.mxu0 0.0
    %1771 = vmatprep.subr.mxu0 0.0
    %1772 = vmatpush2.msra.mxu0 0.0
    %1773 = vmatprep.subr.mxu0 0.0
    %1774 = vmatpush2.msra.mxu0 0.0
    %1775 = vmatprep.subr.mxu0 0.0
    %1776 = vmatpush2.msra.mxu0 0.0
    %1777 = vmatprep.subr.mxu0 0.0
    %1778 = vmatpush2.msra.mxu0 0.0
    %1779 = vmatprep.subr.mxu0 0.0
    %1780 = vmatpush2.msra.mxu0 0.0
    %1781 = vmatprep.subr.mxu0 0.0
    %1782 = vmatpush2.msra.mxu0 0.0
    %1783 = vmatprep.subr.mxu0 0.0
    %1784 = vmatpush2.msra.mxu0 0.0
    %1785 = vmatprep.subr.mxu0 0.0
    %1786 = vmatpush2.msra.mxu0 0.0
    %1787 = vmatprep.subr.mxu0 0.0
    %1788 = vmatpush2.msra.mxu0 0.0
    %1789 = vmatprep.subr.mxu0 0.0
    %1790 = vmatpush2.msra.mxu0 0.0
    %1791 = vmatprep.subr.mxu0 0.0
    %1792 = vmatpush2.msra.mxu0 0.0
    %1793 = vmatprep.subr.mxu0 0.0
    %1794 = vmatpush2.msra.mxu0 0.0
    %1795 = vmatprep.mubr.f32.mxu0 0.0
    %1796 = vmatmul.mubr.f32.gmra.mxu0 %v1726
    %v1797 = vpop.f32.mrf.mxu0
    %v1798 = vadd.f32 %v1723, %v1797
    %v1799 = vpop.f32.mrf.mxu0
    %1800 = vmatprep.mubr.f32.mxu0 0.0
    %1801 = vmatmul.mubr.f32.gmra.mxu0 %v1729
    %v1802 = vpop.f32.mrf.mxu0
    %v1803 = vadd.f32 %v1723, %v1802
    %v1804 = vpop.f32.mrf.mxu0
    %1805 = vdwg.mxu0
    %v1806 = vadd.f32 %v1564, %v1798
    %v1807 = vadd.f32 %v1565, %v1803
    %1808 = vst.msk [vmem:[#allocation2] sm:$0xff] %vm43, %v1806
    %1809 = vst.msk [vmem:[#allocation2 + $0x8] sm:$0xff] %vm43, %v1807
    // Predicated region
    $region38: #{tpu_custom_call.1} parent=1 // pred_check
      _
    $region39: #{tpu_custom_call.1} parent=1 // pred_check_branch
      %1811 = sbr.rel (0) target = $region41
    $region40: #{tpu_custom_call.1} parent=1 // pred_region
      %s1813 = ssub.s32 256, 256
      %1814 = vsyncadd [#allocation3], %s1813
      %s1815 = sshll.u32 [#allocation2], 4
      %s1816 = int_to_ptr.vmem [resolvable:$true] %s1815
      %1821 = dma.vmem_to_hbm [thread:$0]  %s1816, 256, %s9, [#allocation3], 128, 128, 8
    $region41: #{tpu_custom_call.1} parent=1 // pred_fallthru
      _
    // Predicated region
    $region42: #{tpu_custom_call.1} parent=1 // pred_check
      _
    $region43: #{tpu_custom_call.1} parent=1 // pred_check_branch
      %1823 = sbr.rel (0) target = $region45
    $region44: #{tpu_custom_call.1} parent=1 // pred_region
      %1824 = dma.done [#allocation3], 256
    $region45: #{tpu_custom_call.1} parent=1 // pred_fallthru
      _
    %1825 = vsyncpa [#allocation3], 1

</llo_original>
